<compile_context>
chip_gen: v6e
topology: v6e:2x2x1
jax: 0.10.0
libtpu: 0.0.40
codegen_flags: <defaults>
</compile_context>

<pallas_src>
import jax
import jax.numpy as jnp
import numpy as np
from jax.experimental import pallas as pl
from jax.experimental.pallas import tpu as pltpu


# ----------------------------- Pallas kernel ------------------------------ #
def _rnn_listener_kernel(
    lens_ref,    # (Bt, 1)       int32  valid lengths
    logit_ref,   # (T, Bt, V)    bf16   TIME-major speaker logits
    emb_ref,     # (V, De)       bf16   embedding table
    wih_ref,     # (De, 3H)      bf16   input->hidden, gate order [r, z, n]
    whh_ref,     # (H, 3H)       bf16   hidden->hidden (single fused operand)
    bgi_ref,     # (1, 3H)       f32    [b_ir+b_hr, b_iz+b_hz, b_in]
    bhn_ref,     # (1, H)        f32    b_hn (must stay inside r * (.))
    wout_ref,    # (H, H)        bf16   hid_to_hid weight
    bout_ref,    # (1, H)        f32
    out_ref,     # (Bt, H)       f32
    gi_scr,      # VMEM (T, Bt, 3H)    input-side gate pre-activations
):
    T, Bt, V = logit_ref.shape
    H = whh_ref.shape[0]

    # --- Hoisted input projection: two large MXU matmuls, off the serial path.
    # Two-stage (logits @ emb, then @ w_ih) as in the module; folding emb@w_ih
    # would 3x the weight bytes/FLOPs here since 3H > D_emb.
    x = logit_ref[...].reshape(T * Bt, V)                         # bf16
    x_emb = jnp.dot(x, emb_ref[...], preferred_element_type=jnp.float32)
    # Dropout on the embedded message: identity (p=0 / eval).
    # TODO(synk): training-mode dropout would use pltpu.prng_seed/prng_random_bits.
    gi = jnp.dot(x_emb.astype(jnp.bfloat16), wih_ref[...],
                 preferred_element_type=jnp.float32) + bgi_ref[...]
    # Single contiguous time-major scratch store (with Bt a multiple of 8 the
    # reshape is a pure layout no-op; no per-gate / per-step relayout loop).
    gi_scr[...] = gi.reshape(T, Bt, 3 * H).astype(gi_scr.dtype)

    # Hoist loop-invariant loads out of the recurrence.
    w_hh = whh_ref[...]                      # (H, 3H) bf16
    b_hn = bhn_ref[...]                      # (1, H)  f32
    lens = lens_ref[...]                     # (Bt, 1) int32

    # --- Serial GRU recurrence: ONE fused h @ W_hh per step ------------------
    def step(t, h):
        gh = jnp.dot(h.astype(jnp.bfloat16), w_hh,
                     preferred_element_type=jnp.float32)          # (Bt, 3H)
        gi_t = gi_scr[t].astype(jnp.float32)                      # (Bt, 3H)
        r = jax.nn.sigmoid(gi_t[:, 0:H] + gh[:, 0:H])
        z = jax.nn.sigmoid(gi_t[:, H:2 * H] + gh[:, H:2 * H])
        n = jnp.tanh(gi_t[:, 2 * H:] + r * (gh[:, 2 * H:] + b_hn))
        h_new = n + z * (h - n)                                   # == (1-z)*n + z*h
        # pack_padded_sequence semantics: freeze hidden once t >= length.
        return jnp.where(t < lens, h_new, h)

    h0 = jnp.zeros((Bt, H), jnp.float32)
    h_n = jax.lax.fori_loop(0, T, step, h0, unroll=min(T, 8))

    # --- hid_to_hid + unit-norm (matches module: out / (||out|| + 1e-9)) -----
    out = jnp.dot(h_n.astype(jnp.bfloat16), wout_ref[...],
                  preferred_element_type=jnp.float32) + bout_ref[...]
    norm = jnp.sqrt(jnp.sum(out * out, axis=1, keepdims=True))
    out_ref[...] = (out * pl.reciprocal(norm + 1e-9, approx=True)
                    ).astype(out_ref.dtype)


# ------------------------------ Wrapper ------------------------------------ #
def rnn_listener_forward(spk_logit, spk_msg_lens, params, *, b_tile=None,
                         gi_scratch_dtype=jnp.bfloat16):
    """spk_logit: (B, T, V) f32, spk_msg_lens: (B,) int  ->  (B, D_hid) f32."""
    B, T, V = spk_logit.shape
    De = params["emb"].shape[1]
    H = params["whh"].shape[0]

    if b_tile is None:
        # Prefer >=2 batch tiles so ("parallel",) shards across v7x's 2 TCs;
        # sub-batch tiles must be a multiple of 8 (lens/out BlockSpecs).  On
        # single-TC chips growing Bt beats adding grid tiles, so only split
        # when the batch is comfortably large.  Toy B=4 -> one full tile.
        half = ((B // 2) // 8) * 8
        b_tile = half if (half >= 8 and B % half == 0) else B

    # ---- One-time parameter casts / folds (precomputed at model setup) -----
    emb_b = params["emb"].astype(jnp.bfloat16)
    wih_b = params["wih"].astype(jnp.bfloat16)
    whh_b = params["whh"].astype(jnp.bfloat16)       # single (H, 3H) operand
    wout_b = params["wout"].astype(jnp.bfloat16)
    b_ih, b_hh = params["bih"], params["bhh"]
    # r,z biases pre-summed; the n-gate hidden bias stays separate because it
    # sits inside r * (W_hn h + b_hn).
    b_gi = jnp.concatenate(
        [b_ih[:, :2 * H] + b_hh[:, :2 * H], b_ih[:, 2 * H:]], axis=1)  # (1,3H)
    b_hn = b_hh[:, 2 * H:]                                             # (1,H)

    # Time-major, bf16 logits: makes the in-kernel GI store a single contiguous
    # write and halves the dominant HBM->VMEM DMA.
    logits_tm = jnp.transpose(spk_logit, (1, 0, 2)).astype(jnp.bfloat16)
    lens2d = spk_msg_lens.astype(jnp.int32).reshape(B, 1)

    flops = (2 * B * T * V * De + 2 * B * T * De * 3 * H
             + 2 * B * T * H * 3 * H + 2 * B * H * H)
    transcendentals = B * T * 3 * H + B
    bytes_accessed = (B * T * V * 2                      # bf16 logits
                      + (V * De + De * 3 * H + H * 3 * H + H * H) * 2
                      + (3 * H + H + H) * 4 + B * H * 4)

    def _full(shape):
        nd = len(shape)
        return pl.BlockSpec(shape, lambda *_: (0,) * nd)

    return pl.pallas_call(
        _rnn_listener_kernel,
        out_shape=jax.ShapeDtypeStruct((B, H), jnp.float32),
        grid_spec=pltpu.PrefetchScalarGridSpec(
            num_scalar_prefetch=0,
            grid=(pl.cdiv(B, b_tile),),
            in_specs=[
                pl.BlockSpec((b_tile, 1), lambda b: (b, 0)),          # lens
                pl.BlockSpec((T, b_tile, V), lambda b: (0, b, 0)),    # logits
                _full((V, De)),                                       # emb
                _full((De, 3 * H)),                                   # w_ih
                _full((H, 3 * H)),                                    # w_hh
                _full((1, 3 * H)),                                    # b_gi
                _full((1, H)),                                        # b_hn
                _full((H, H)),                                        # w_out
                _full((1, H)),                                        # b_out
            ],
            out_specs=pl.BlockSpec((b_tile, H), lambda b: (b, 0)),
            scratch_shapes=[pltpu.VMEM((T, b_tile, 3 * H), gi_scratch_dtype)],
        ),
        compiler_params=pltpu.CompilerParams(
            dimension_semantics=("parallel",),
            vmem_limit_bytes=32 * 1024 * 1024),
        cost_estimate=pl.CostEstimate(flops=flops,
                                      transcendentals=transcendentals,
                                      bytes_accessed=bytes_accessed),
    )(lens2d, logits_tm, emb_b, wih_b, whh_b, b_gi, b_hn, wout_b,
      params["bout"])


# ----------------------- Pure-JAX reference (checking) --------------------- #
def rnn_listener_reference(spk_logit, spk_msg_lens, params):
    B, T, V = spk_logit.shape
    H = params["whh"].shape[0]
    emb = spk_logit @ params["emb"]                        # (B, T, De)
    h = jnp.zeros((B, H), jnp.float32)
    for t in range(T):
        x = emb[:, t, :]
        gi = x @ params["wih"] + params["bih"][0]
        gh = h @ params["whh"] + params["bhh"][0]
        r = jax.nn.sigmoid(gi[:, :H] + gh[:, :H])
        z = jax.nn.sigmoid(gi[:, H:2 * H] + gh[:, H:2 * H])
        n = jnp.tanh(gi[:, 2 * H:] + r * gh[:, 2 * H:])
        h_new = (1.0 - z) * n + z * h
        valid = (t < spk_msg_lens)[:, None]
        h = jnp.where(valid, h_new, h)
    out = h @ params["wout"] + params["bout"][0]
    norm = jnp.sqrt(jnp.sum(out * out, axis=1, keepdims=True)) + 1e-9
    return out / norm


# ------------------------------- Main --------------------------------------- #
if __name__ == "__main__":
    # Small config consistent with the module's __init__
    # (num_layers=1, num_directions=1, dropout=0, unit_norm=True).
    B, T = 4, 8
    vocab_size, D_emb, D_hid = 24, 32, 32

    key = jax.random.PRNGKey(0)
    keys = jax.random.split(key, 10)

    # Deterministic synthetic parameters (no checkpoint). Gate order [r, z, n].
    emb_w = 0.1 * jax.random.normal(keys[0], (vocab_size, D_emb), jnp.float32)
    emb_w = emb_w.at[0].set(0.0)  # padding_idx=0
    s = 1.0 / np.sqrt(D_hid)
    params = {
        "emb": emb_w,
        "wih": jax.random.uniform(keys[1], (D_emb, 3 * D_hid), jnp.float32, -s, s),
        "whh": jax.random.uniform(keys[2], (D_hid, 3 * D_hid), jnp.float32, -s, s),
        "bih": jax.random.uniform(keys[3], (1, 3 * D_hid), jnp.float32, -s, s),
        "bhh": jax.random.uniform(keys[4], (1, 3 * D_hid), jnp.float32, -s, s),
        "wout": jax.random.uniform(keys[5], (D_hid, D_hid), jnp.float32, -s, s),
        "bout": jax.random.uniform(keys[6], (1, D_hid), jnp.float32, -s, s),
    }

    # Example inputs: speaker logits (softmax over vocab) and per-example lengths.
    spk_logit = jax.nn.softmax(
        jax.random.normal(keys[7], (B, T, vocab_size), jnp.float32), axis=-1
    )
    spk_msg_lens = jnp.array([8, 5, 3, 6], dtype=jnp.int32)

    out = rnn_listener_forward(spk_logit, spk_msg_lens, params)
    out = jax.block_until_ready(out)

    ref = rnn_listener_reference(spk_logit, spk_msg_lens, params)
    # Tolerance accounts for bf16 MXU operands, bf16 logits feed and bf16 GI
    # scratch (all gate/accumulation math stays f32).
    np.testing.assert_allclose(np.asarray(out), np.asarray(ref),
                               atol=2e-2, rtol=2e-2)

    print("KERNEL_OK")
</pallas_src>

<mosaic_0001>
module attributes {stable_mosaic.version = 11 : i64} {
  func.func @_rnn_listener_kernel(%arg0: i32, %arg1: memref<4x1xi32, #tpu.memory_space<vmem>>, %arg2: memref<8x4x24xbf16, #tpu.memory_space<vmem>>, %arg3: memref<24x32xbf16, #tpu.memory_space<vmem>>, %arg4: memref<32x96xbf16, #tpu.memory_space<vmem>>, %arg5: memref<32x96xbf16, #tpu.memory_space<vmem>>, %arg6: memref<1x96xf32, #tpu.memory_space<vmem>>, %arg7: memref<1x32xf32, #tpu.memory_space<vmem>>, %arg8: memref<32x32xbf16, #tpu.memory_space<vmem>>, %arg9: memref<1x32xf32, #tpu.memory_space<vmem>>, %arg10: memref<4x32xf32, #tpu.memory_space<vmem>>, %arg11: memref<8x4x96xbf16, #tpu.memory_space<vmem>>) attributes {dimension_semantics = [#tpu.dimension_semantics<parallel>], iteration_bounds = array<i64: 1>, scalar_prefetch = 0 : i64, scratch_operands = 1 : i64, tpu.core_type = #tpu.core_type<tc>, window_params = [{transform_indices = @transform_0, window_bounds = array<i64: 4, 1>}, {transform_indices = @transform_1, window_bounds = array<i64: 8, 4, 24>}, {pipeline_mode = #tpu.pipeline_mode<synchronous>, transform_indices = @transform_2, window_bounds = array<i64: 24, 32>}, {pipeline_mode = #tpu.pipeline_mode<synchronous>, transform_indices = @transform_3, window_bounds = array<i64: 32, 96>}, {pipeline_mode = #tpu.pipeline_mode<synchronous>, transform_indices = @transform_4, window_bounds = array<i64: 32, 96>}, {pipeline_mode = #tpu.pipeline_mode<synchronous>, transform_indices = @transform_5, window_bounds = array<i64: 1, 96>}, {pipeline_mode = #tpu.pipeline_mode<synchronous>, transform_indices = @transform_6, window_bounds = array<i64: 1, 32>}, {pipeline_mode = #tpu.pipeline_mode<synchronous>, transform_indices = @transform_7, window_bounds = array<i64: 32, 32>}, {pipeline_mode = #tpu.pipeline_mode<synchronous>, transform_indices = @transform_8, window_bounds = array<i64: 1, 32>}, {transform_indices = @transform_9, window_bounds = array<i64: 4, 32>}]} {
    %c0 = arith.constant 0 : index
    %c0_0 = arith.constant 0 : index
    %c0_1 = arith.constant 0 : index
    %0 = vector.load %arg2[%c0, %c0_0, %c0_1] : memref<8x4x24xbf16, #tpu.memory_space<vmem>>, vector<8x4x24xbf16>
    %1 = vector.shape_cast %0 : vector<8x4x24xbf16> to vector<32x24xbf16>
    %c0_2 = arith.constant 0 : index
    %c0_3 = arith.constant 0 : index
    %2 = vector.load %arg3[%c0_2, %c0_3] : memref<24x32xbf16, #tpu.memory_space<vmem>>, vector<24x32xbf16>
    %cst = arith.constant dense<0.000000e+00> : vector<32x32xf32>
    %3 = tpu.matmul %1, %2, %cst {dimension_numbers = #tpu.dot_dimension_numbers<[1], [0], [0], [1], [0, 0, 1, 1], [], []>} : vector<32x24xbf16>, vector<24x32xbf16>, vector<32x32xf32> -> vector<32x32xf32>
    %4 = arith.truncf %3 : vector<32x32xf32> to vector<32x32xbf16>
    %c0_4 = arith.constant 0 : index
    %c0_5 = arith.constant 0 : index
    %5 = vector.load %arg4[%c0_4, %c0_5] : memref<32x96xbf16, #tpu.memory_space<vmem>>, vector<32x96xbf16>
    %cst_6 = arith.constant dense<0.000000e+00> : vector<32x96xf32>
    %6 = tpu.matmul %4, %5, %cst_6 {dimension_numbers = #tpu.dot_dimension_numbers<[1], [0], [0], [1], [0, 0, 1, 1], [], []>} : vector<32x32xbf16>, vector<32x96xbf16>, vector<32x96xf32> -> vector<32x96xf32>
    %c0_7 = arith.constant 0 : index
    %c0_8 = arith.constant 0 : index
    %7 = vector.load %arg6[%c0_7, %c0_8] : memref<1x96xf32, #tpu.memory_space<vmem>>, vector<1x96xf32>
    %8 = vector.broadcast %7 : vector<1x96xf32> to vector<32x96xf32>
    %9 = arith.addf %6, %8 : vector<32x96xf32>
    %10 = vector.shape_cast %9 : vector<32x96xf32> to vector<8x4x96xf32>
    %11 = arith.truncf %10 : vector<8x4x96xf32> to vector<8x4x96xbf16>
    %c0_9 = arith.constant 0 : index
    %c0_10 = arith.constant 0 : index
    %c0_11 = arith.constant 0 : index
    %12 = vector.load %arg11[%c0_9, %c0_10, %c0_11] : memref<8x4x96xbf16, #tpu.memory_space<vmem>>, vector<8x4x96xbf16>
    tpu.vector_store %arg11[%c0_9, %c0_10, %c0_11], %11 {strides = array<i32>} : memref<8x4x96xbf16, #tpu.memory_space<vmem>>, vector<8x4x96xbf16>,
    %c0_12 = arith.constant 0 : index
    %c0_13 = arith.constant 0 : index
    %13 = vector.load %arg5[%c0_12, %c0_13] : memref<32x96xbf16, #tpu.memory_space<vmem>>, vector<32x96xbf16>
    %c0_14 = arith.constant 0 : index
    %c0_15 = arith.constant 0 : index
    %14 = vector.load %arg7[%c0_14, %c0_15] : memref<1x32xf32, #tpu.memory_space<vmem>>, vector<1x32xf32>
    %c0_16 = arith.constant 0 : index
    %c0_17 = arith.constant 0 : index
    %15 = vector.load %arg1[%c0_16, %c0_17] : memref<4x1xi32, #tpu.memory_space<vmem>>, vector<4x1xi32>
    %cst_18 = arith.constant 0.000000e+00 : f32
    %16 = vector.broadcast %cst_18 : f32 to vector<4x32xf32>
    %c0_i32 = arith.constant 0 : i32
    %17 = arith.truncf %16 : vector<4x32xf32> to vector<4x32xbf16>
    %cst_19 = arith.constant dense<0.000000e+00> : vector<4x96xf32>
    %18 = tpu.matmul %17, %13, %cst_19 {dimension_numbers = #tpu.dot_dimension_numbers<[1], [0], [0], [1], [0, 0, 1, 1], [], []>} : vector<4x32xbf16>, vector<32x96xbf16>, vector<4x96xf32> -> vector<4x96xf32>
    %19 = arith.index_cast %c0_i32 : i32 to index
    %c0_20 = arith.constant 0 : index
    %c0_21 = arith.constant 0 : index
    %20 = vector.load %arg11[%19, %c0_20, %c0_21] : memref<8x4x96xbf16, #tpu.memory_space<vmem>>, vector<1x4x96xbf16>
    %21 = vector.shape_cast %20 : vector<1x4x96xbf16> to vector<4x96xbf16>
    %22 = arith.extf %21 : vector<4x96xbf16> to vector<4x96xf32>
    %23 = vector.extract_strided_slice %22 {offsets = [0, 0], sizes = [4, 32], strides = [1, 1]} : vector<4x96xf32> to vector<4x32xf32>
    %24 = vector.extract_strided_slice %18 {offsets = [0, 0], sizes = [4, 32], strides = [1, 1]} : vector<4x96xf32> to vector<4x32xf32>
    %25 = arith.addf %23, %24 : vector<4x32xf32>
    %26 = arith.negf %25 : vector<4x32xf32>
    %27 = math.exp %26 : vector<4x32xf32>
    %cst_22 = arith.constant 1.000000e+00 : f32
    %28 = vector.broadcast %cst_22 : f32 to vector<4x32xf32>
    %29 = arith.addf %28, %27 : vector<4x32xf32>
    %30 = arith.divf %28, %29 : vector<4x32xf32>
    %31 = vector.extract_strided_slice %22 {offsets = [0, 32], sizes = [4, 32], strides = [1, 1]} : vector<4x96xf32> to vector<4x32xf32>
    %32 = vector.extract_strided_slice %18 {offsets = [0, 32], sizes = [4, 32], strides = [1, 1]} : vector<4x96xf32> to vector<4x32xf32>
    %33 = arith.addf %31, %32 : vector<4x32xf32>
    %34 = arith.negf %33 : vector<4x32xf32>
    %35 = math.exp %34 : vector<4x32xf32>
    %cst_23 = arith.constant 1.000000e+00 : f32
    %36 = vector.broadcast %cst_23 : f32 to vector<4x32xf32>
    %37 = arith.addf %36, %35 : vector<4x32xf32>
    %38 = arith.divf %36, %37 : vector<4x32xf32>
    %39 = vector.extract_strided_slice %22 {offsets = [0, 64], sizes = [4, 32], strides = [1, 1]} : vector<4x96xf32> to vector<4x32xf32>
    %40 = vector.extract_strided_slice %18 {offsets = [0, 64], sizes = [4, 32], strides = [1, 1]} : vector<4x96xf32> to vector<4x32xf32>
    %41 = vector.broadcast %14 : vector<1x32xf32> to vector<4x32xf32>
    %42 = arith.addf %40, %41 : vector<4x32xf32>
    %43 = arith.mulf %30, %42 : vector<4x32xf32>
    %44 = arith.addf %39, %43 : vector<4x32xf32>
    %45 = math.tanh %44 : vector<4x32xf32>
    %46 = arith.subf %16, %45 : vector<4x32xf32>
    %47 = arith.mulf %38, %46 : vector<4x32xf32>
    %48 = arith.addf %45, %47 : vector<4x32xf32>
    %49 = vector.broadcast %c0_i32 : i32 to vector<4x1xi32>
    %50 = arith.cmpi slt, %49, %15 : vector<4x1xi32>
    %51 = vector.shape_cast %50 : vector<4x1xi1> to vector<4x1xi1>
    %52 = vector.broadcast %51 : vector<4x1xi1> to vector<4x32xi1>
    %53 = arith.select %52, %48, %16 : vector<4x32xi1>, vector<4x32xf32>
    %c1_i32 = arith.constant 1 : i32
    %54 = arith.truncf %53 : vector<4x32xf32> to vector<4x32xbf16>
    %cst_24 = arith.constant dense<0.000000e+00> : vector<4x96xf32>
    %55 = tpu.matmul %54, %13, %cst_24 {dimension_numbers = #tpu.dot_dimension_numbers<[1], [0], [0], [1], [0, 0, 1, 1], [], []>} : vector<4x32xbf16>, vector<32x96xbf16>, vector<4x96xf32> -> vector<4x96xf32>
    %56 = arith.index_cast %c1_i32 : i32 to index
    %c0_25 = arith.constant 0 : index
    %c0_26 = arith.constant 0 : index
    %57 = vector.load %arg11[%56, %c0_25, %c0_26] : memref<8x4x96xbf16, #tpu.memory_space<vmem>>, vector<1x4x96xbf16>
    %58 = vector.shape_cast %57 : vector<1x4x96xbf16> to vector<4x96xbf16>
    %59 = arith.extf %58 : vector<4x96xbf16> to vector<4x96xf32>
    %60 = vector.extract_strided_slice %59 {offsets = [0, 0], sizes = [4, 32], strides = [1, 1]} : vector<4x96xf32> to vector<4x32xf32>
    %61 = vector.extract_strided_slice %55 {offsets = [0, 0], sizes = [4, 32], strides = [1, 1]} : vector<4x96xf32> to vector<4x32xf32>
    %62 = arith.addf %60, %61 : vector<4x32xf32>
    %63 = arith.negf %62 : vector<4x32xf32>
    %64 = math.exp %63 : vector<4x32xf32>
    %cst_27 = arith.constant 1.000000e+00 : f32
    %65 = vector.broadcast %cst_27 : f32 to vector<4x32xf32>
    %66 = arith.addf %65, %64 : vector<4x32xf32>
    %67 = arith.divf %65, %66 : vector<4x32xf32>
    %68 = vector.extract_strided_slice %59 {offsets = [0, 32], sizes = [4, 32], strides = [1, 1]} : vector<4x96xf32> to vector<4x32xf32>
    %69 = vector.extract_strided_slice %55 {offsets = [0, 32], sizes = [4, 32], strides = [1, 1]} : vector<4x96xf32> to vector<4x32xf32>
    %70 = arith.addf %68, %69 : vector<4x32xf32>
    %71 = arith.negf %70 : vector<4x32xf32>
    %72 = math.exp %71 : vector<4x32xf32>
    %cst_28 = arith.constant 1.000000e+00 : f32
    %73 = vector.broadcast %cst_28 : f32 to vector<4x32xf32>
    %74 = arith.addf %73, %72 : vector<4x32xf32>
    %75 = arith.divf %73, %74 : vector<4x32xf32>
    %76 = vector.extract_strided_slice %59 {offsets = [0, 64], sizes = [4, 32], strides = [1, 1]} : vector<4x96xf32> to vector<4x32xf32>
    %77 = vector.extract_strided_slice %55 {offsets = [0, 64], sizes = [4, 32], strides = [1, 1]} : vector<4x96xf32> to vector<4x32xf32>
    %78 = vector.broadcast %14 : vector<1x32xf32> to vector<4x32xf32>
    %79 = arith.addf %77, %78 : vector<4x32xf32>
    %80 = arith.mulf %67, %79 : vector<4x32xf32>
    %81 = arith.addf %76, %80 : vector<4x32xf32>
    %82 = math.tanh %81 : vector<4x32xf32>
    %83 = arith.subf %53, %82 : vector<4x32xf32>
    %84 = arith.mulf %75, %83 : vector<4x32xf32>
    %85 = arith.addf %82, %84 : vector<4x32xf32>
    %86 = vector.broadcast %c1_i32 : i32 to vector<4x1xi32>
    %87 = arith.cmpi slt, %86, %15 : vector<4x1xi32>
    %88 = vector.shape_cast %87 : vector<4x1xi1> to vector<4x1xi1>
    %89 = vector.broadcast %88 : vector<4x1xi1> to vector<4x32xi1>
    %90 = arith.select %89, %85, %53 : vector<4x32xi1>, vector<4x32xf32>
    %c2_i32 = arith.constant 2 : i32
    %91 = arith.truncf %90 : vector<4x32xf32> to vector<4x32xbf16>
    %cst_29 = arith.constant dense<0.000000e+00> : vector<4x96xf32>
    %92 = tpu.matmul %91, %13, %cst_29 {dimension_numbers = #tpu.dot_dimension_numbers<[1], [0], [0], [1], [0, 0, 1, 1], [], []>} : vector<4x32xbf16>, vector<32x96xbf16>, vector<4x96xf32> -> vector<4x96xf32>
    %93 = arith.index_cast %c2_i32 : i32 to index
    %c0_30 = arith.constant 0 : index
    %c0_31 = arith.constant 0 : index
    %94 = vector.load %arg11[%93, %c0_30, %c0_31] : memref<8x4x96xbf16, #tpu.memory_space<vmem>>, vector<1x4x96xbf16>
    %95 = vector.shape_cast %94 : vector<1x4x96xbf16> to vector<4x96xbf16>
    %96 = arith.extf %95 : vector<4x96xbf16> to vector<4x96xf32>
    %97 = vector.extract_strided_slice %96 {offsets = [0, 0], sizes = [4, 32], strides = [1, 1]} : vector<4x96xf32> to vector<4x32xf32>
    %98 = vector.extract_strided_slice %92 {offsets = [0, 0], sizes = [4, 32], strides = [1, 1]} : vector<4x96xf32> to vector<4x32xf32>
    %99 = arith.addf %97, %98 : vector<4x32xf32>
    %100 = arith.negf %99 : vector<4x32xf32>
    %101 = math.exp %100 : vector<4x32xf32>
    %cst_32 = arith.constant 1.000000e+00 : f32
    %102 = vector.broadcast %cst_32 : f32 to vector<4x32xf32>
    %103 = arith.addf %102, %101 : vector<4x32xf32>
    %104 = arith.divf %102, %103 : vector<4x32xf32>
    %105 = vector.extract_strided_slice %96 {offsets = [0, 32], sizes = [4, 32], strides = [1, 1]} : vector<4x96xf32> to vector<4x32xf32>
    %106 = vector.extract_strided_slice %92 {offsets = [0, 32], sizes = [4, 32], strides = [1, 1]} : vector<4x96xf32> to vector<4x32xf32>
    %107 = arith.addf %105, %106 : vector<4x32xf32>
    %108 = arith.negf %107 : vector<4x32xf32>
    %109 = math.exp %108 : vector<4x32xf32>
    %cst_33 = arith.constant 1.000000e+00 : f32
    %110 = vector.broadcast %cst_33 : f32 to vector<4x32xf32>
    %111 = arith.addf %110, %109 : vector<4x32xf32>
    %112 = arith.divf %110, %111 : vector<4x32xf32>
    %113 = vector.extract_strided_slice %96 {offsets = [0, 64], sizes = [4, 32], strides = [1, 1]} : vector<4x96xf32> to vector<4x32xf32>
    %114 = vector.extract_strided_slice %92 {offsets = [0, 64], sizes = [4, 32], strides = [1, 1]} : vector<4x96xf32> to vector<4x32xf32>
    %115 = vector.broadcast %14 : vector<1x32xf32> to vector<4x32xf32>
    %116 = arith.addf %114, %115 : vector<4x32xf32>
    %117 = arith.mulf %104, %116 : vector<4x32xf32>
    %118 = arith.addf %113, %117 : vector<4x32xf32>
    %119 = math.tanh %118 : vector<4x32xf32>
    %120 = arith.subf %90, %119 : vector<4x32xf32>
    %121 = arith.mulf %112, %120 : vector<4x32xf32>
    %122 = arith.addf %119, %121 : vector<4x32xf32>
    %123 = vector.broadcast %c2_i32 : i32 to vector<4x1xi32>
    %124 = arith.cmpi slt, %123, %15 : vector<4x1xi32>
    %125 = vector.shape_cast %124 : vector<4x1xi1> to vector<4x1xi1>
    %126 = vector.broadcast %125 : vector<4x1xi1> to vector<4x32xi1>
    %127 = arith.select %126, %122, %90 : vector<4x32xi1>, vector<4x32xf32>
    %c3_i32 = arith.constant 3 : i32
    %128 = arith.truncf %127 : vector<4x32xf32> to vector<4x32xbf16>
    %cst_34 = arith.constant dense<0.000000e+00> : vector<4x96xf32>
    %129 = tpu.matmul %128, %13, %cst_34 {dimension_numbers = #tpu.dot_dimension_numbers<[1], [0], [0], [1], [0, 0, 1, 1], [], []>} : vector<4x32xbf16>, vector<32x96xbf16>, vector<4x96xf32> -> vector<4x96xf32>
    %130 = arith.index_cast %c3_i32 : i32 to index
    %c0_35 = arith.constant 0 : index
    %c0_36 = arith.constant 0 : index
    %131 = vector.load %arg11[%130, %c0_35, %c0_36] : memref<8x4x96xbf16, #tpu.memory_space<vmem>>, vector<1x4x96xbf16>
    %132 = vector.shape_cast %131 : vector<1x4x96xbf16> to vector<4x96xbf16>
    %133 = arith.extf %132 : vector<4x96xbf16> to vector<4x96xf32>
    %134 = vector.extract_strided_slice %133 {offsets = [0, 0], sizes = [4, 32], strides = [1, 1]} : vector<4x96xf32> to vector<4x32xf32>
    %135 = vector.extract_strided_slice %129 {offsets = [0, 0], sizes = [4, 32], strides = [1, 1]} : vector<4x96xf32> to vector<4x32xf32>
    %136 = arith.addf %134, %135 : vector<4x32xf32>
    %137 = arith.negf %136 : vector<4x32xf32>
    %138 = math.exp %137 : vector<4x32xf32>
    %cst_37 = arith.constant 1.000000e+00 : f32
    %139 = vector.broadcast %cst_37 : f32 to vector<4x32xf32>
    %140 = arith.addf %139, %138 : vector<4x32xf32>
    %141 = arith.divf %139, %140 : vector<4x32xf32>
    %142 = vector.extract_strided_slice %133 {offsets = [0, 32], sizes = [4, 32], strides = [1, 1]} : vector<4x96xf32> to vector<4x32xf32>
    %143 = vector.extract_strided_slice %129 {offsets = [0, 32], sizes = [4, 32], strides = [1, 1]} : vector<4x96xf32> to vector<4x32xf32>
    %144 = arith.addf %142, %143 : vector<4x32xf32>
    %145 = arith.negf %144 : vector<4x32xf32>
    %146 = math.exp %145 : vector<4x32xf32>
    %cst_38 = arith.constant 1.000000e+00 : f32
    %147 = vector.broadcast %cst_38 : f32 to vector<4x32xf32>
    %148 = arith.addf %147, %146 : vector<4x32xf32>
    %149 = arith.divf %147, %148 : vector<4x32xf32>
    %150 = vector.extract_strided_slice %133 {offsets = [0, 64], sizes = [4, 32], strides = [1, 1]} : vector<4x96xf32> to vector<4x32xf32>
    %151 = vector.extract_strided_slice %129 {offsets = [0, 64], sizes = [4, 32], strides = [1, 1]} : vector<4x96xf32> to vector<4x32xf32>
    %152 = vector.broadcast %14 : vector<1x32xf32> to vector<4x32xf32>
    %153 = arith.addf %151, %152 : vector<4x32xf32>
    %154 = arith.mulf %141, %153 : vector<4x32xf32>
    %155 = arith.addf %150, %154 : vector<4x32xf32>
    %156 = math.tanh %155 : vector<4x32xf32>
    %157 = arith.subf %127, %156 : vector<4x32xf32>
    %158 = arith.mulf %149, %157 : vector<4x32xf32>
    %159 = arith.addf %156, %158 : vector<4x32xf32>
    %160 = vector.broadcast %c3_i32 : i32 to vector<4x1xi32>
    %161 = arith.cmpi slt, %160, %15 : vector<4x1xi32>
    %162 = vector.shape_cast %161 : vector<4x1xi1> to vector<4x1xi1>
    %163 = vector.broadcast %162 : vector<4x1xi1> to vector<4x32xi1>
    %164 = arith.select %163, %159, %127 : vector<4x32xi1>, vector<4x32xf32>
    %c4_i32 = arith.constant 4 : i32
    %165 = arith.truncf %164 : vector<4x32xf32> to vector<4x32xbf16>
    %cst_39 = arith.constant dense<0.000000e+00> : vector<4x96xf32>
    %166 = tpu.matmul %165, %13, %cst_39 {dimension_numbers = #tpu.dot_dimension_numbers<[1], [0], [0], [1], [0, 0, 1, 1], [], []>} : vector<4x32xbf16>, vector<32x96xbf16>, vector<4x96xf32> -> vector<4x96xf32>
    %167 = arith.index_cast %c4_i32 : i32 to index
    %c0_40 = arith.constant 0 : index
    %c0_41 = arith.constant 0 : index
    %168 = vector.load %arg11[%167, %c0_40, %c0_41] : memref<8x4x96xbf16, #tpu.memory_space<vmem>>, vector<1x4x96xbf16>
    %169 = vector.shape_cast %168 : vector<1x4x96xbf16> to vector<4x96xbf16>
    %170 = arith.extf %169 : vector<4x96xbf16> to vector<4x96xf32>
    %171 = vector.extract_strided_slice %170 {offsets = [0, 0], sizes = [4, 32], strides = [1, 1]} : vector<4x96xf32> to vector<4x32xf32>
    %172 = vector.extract_strided_slice %166 {offsets = [0, 0], sizes = [4, 32], strides = [1, 1]} : vector<4x96xf32> to vector<4x32xf32>
    %173 = arith.addf %171, %172 : vector<4x32xf32>
    %174 = arith.negf %173 : vector<4x32xf32>
    %175 = math.exp %174 : vector<4x32xf32>
    %cst_42 = arith.constant 1.000000e+00 : f32
    %176 = vector.broadcast %cst_42 : f32 to vector<4x32xf32>
    %177 = arith.addf %176, %175 : vector<4x32xf32>
    %178 = arith.divf %176, %177 : vector<4x32xf32>
    %179 = vector.extract_strided_slice %170 {offsets = [0, 32], sizes = [4, 32], strides = [1, 1]} : vector<4x96xf32> to vector<4x32xf32>
    %180 = vector.extract_strided_slice %166 {offsets = [0, 32], sizes = [4, 32], strides = [1, 1]} : vector<4x96xf32> to vector<4x32xf32>
    %181 = arith.addf %179, %180 : vector<4x32xf32>
    %182 = arith.negf %181 : vector<4x32xf32>
    %183 = math.exp %182 : vector<4x32xf32>
    %cst_43 = arith.constant 1.000000e+00 : f32
    %184 = vector.broadcast %cst_43 : f32 to vector<4x32xf32>
    %185 = arith.addf %184, %183 : vector<4x32xf32>
    %186 = arith.divf %184, %185 : vector<4x32xf32>
    %187 = vector.extract_strided_slice %170 {offsets = [0, 64], sizes = [4, 32], strides = [1, 1]} : vector<4x96xf32> to vector<4x32xf32>
    %188 = vector.extract_strided_slice %166 {offsets = [0, 64], sizes = [4, 32], strides = [1, 1]} : vector<4x96xf32> to vector<4x32xf32>
    %189 = vector.broadcast %14 : vector<1x32xf32> to vector<4x32xf32>
    %190 = arith.addf %188, %189 : vector<4x32xf32>
    %191 = arith.mulf %178, %190 : vector<4x32xf32>
    %192 = arith.addf %187, %191 : vector<4x32xf32>
    %193 = math.tanh %192 : vector<4x32xf32>
    %194 = arith.subf %164, %193 : vector<4x32xf32>
    %195 = arith.mulf %186, %194 : vector<4x32xf32>
    %196 = arith.addf %193, %195 : vector<4x32xf32>
    %197 = vector.broadcast %c4_i32 : i32 to vector<4x1xi32>
    %198 = arith.cmpi slt, %197, %15 : vector<4x1xi32>
    %199 = vector.shape_cast %198 : vector<4x1xi1> to vector<4x1xi1>
    %200 = vector.broadcast %199 : vector<4x1xi1> to vector<4x32xi1>
    %201 = arith.select %200, %196, %164 : vector<4x32xi1>, vector<4x32xf32>
    %c5_i32 = arith.constant 5 : i32
    %202 = arith.truncf %201 : vector<4x32xf32> to vector<4x32xbf16>
    %cst_44 = arith.constant dense<0.000000e+00> : vector<4x96xf32>
    %203 = tpu.matmul %202, %13, %cst_44 {dimension_numbers = #tpu.dot_dimension_numbers<[1], [0], [0], [1], [0, 0, 1, 1], [], []>} : vector<4x32xbf16>, vector<32x96xbf16>, vector<4x96xf32> -> vector<4x96xf32>
    %204 = arith.index_cast %c5_i32 : i32 to index
    %c0_45 = arith.constant 0 : index
    %c0_46 = arith.constant 0 : index
    %205 = vector.load %arg11[%204, %c0_45, %c0_46] : memref<8x4x96xbf16, #tpu.memory_space<vmem>>, vector<1x4x96xbf16>
    %206 = vector.shape_cast %205 : vector<1x4x96xbf16> to vector<4x96xbf16>
    %207 = arith.extf %206 : vector<4x96xbf16> to vector<4x96xf32>
    %208 = vector.extract_strided_slice %207 {offsets = [0, 0], sizes = [4, 32], strides = [1, 1]} : vector<4x96xf32> to vector<4x32xf32>
    %209 = vector.extract_strided_slice %203 {offsets = [0, 0], sizes = [4, 32], strides = [1, 1]} : vector<4x96xf32> to vector<4x32xf32>
    %210 = arith.addf %208, %209 : vector<4x32xf32>
    %211 = arith.negf %210 : vector<4x32xf32>
    %212 = math.exp %211 : vector<4x32xf32>
    %cst_47 = arith.constant 1.000000e+00 : f32
    %213 = vector.broadcast %cst_47 : f32 to vector<4x32xf32>
    %214 = arith.addf %213, %212 : vector<4x32xf32>
    %215 = arith.divf %213, %214 : vector<4x32xf32>
    %216 = vector.extract_strided_slice %207 {offsets = [0, 32], sizes = [4, 32], strides = [1, 1]} : vector<4x96xf32> to vector<4x32xf32>
    %217 = vector.extract_strided_slice %203 {offsets = [0, 32], sizes = [4, 32], strides = [1, 1]} : vector<4x96xf32> to vector<4x32xf32>
    %218 = arith.addf %216, %217 : vector<4x32xf32>
    %219 = arith.negf %218 : vector<4x32xf32>
    %220 = math.exp %219 : vector<4x32xf32>
    %cst_48 = arith.constant 1.000000e+00 : f32
    %221 = vector.broadcast %cst_48 : f32 to vector<4x32xf32>
    %222 = arith.addf %221, %220 : vector<4x32xf32>
    %223 = arith.divf %221, %222 : vector<4x32xf32>
    %224 = vector.extract_strided_slice %207 {offsets = [0, 64], sizes = [4, 32], strides = [1, 1]} : vector<4x96xf32> to vector<4x32xf32>
    %225 = vector.extract_strided_slice %203 {offsets = [0, 64], sizes = [4, 32], strides = [1, 1]} : vector<4x96xf32> to vector<4x32xf32>
    %226 = vector.broadcast %14 : vector<1x32xf32> to vector<4x32xf32>
    %227 = arith.addf %225, %226 : vector<4x32xf32>
    %228 = arith.mulf %215, %227 : vector<4x32xf32>
    %229 = arith.addf %224, %228 : vector<4x32xf32>
    %230 = math.tanh %229 : vector<4x32xf32>
    %231 = arith.subf %201, %230 : vector<4x32xf32>
    %232 = arith.mulf %223, %231 : vector<4x32xf32>
    %233 = arith.addf %230, %232 : vector<4x32xf32>
    %234 = vector.broadcast %c5_i32 : i32 to vector<4x1xi32>
    %235 = arith.cmpi slt, %234, %15 : vector<4x1xi32>
    %236 = vector.shape_cast %235 : vector<4x1xi1> to vector<4x1xi1>
    %237 = vector.broadcast %236 : vector<4x1xi1> to vector<4x32xi1>
    %238 = arith.select %237, %233, %201 : vector<4x32xi1>, vector<4x32xf32>
    %c6_i32 = arith.constant 6 : i32
    %239 = arith.truncf %238 : vector<4x32xf32> to vector<4x32xbf16>
    %cst_49 = arith.constant dense<0.000000e+00> : vector<4x96xf32>
    %240 = tpu.matmul %239, %13, %cst_49 {dimension_numbers = #tpu.dot_dimension_numbers<[1], [0], [0], [1], [0, 0, 1, 1], [], []>} : vector<4x32xbf16>, vector<32x96xbf16>, vector<4x96xf32> -> vector<4x96xf32>
    %241 = arith.index_cast %c6_i32 : i32 to index
    %c0_50 = arith.constant 0 : index
    %c0_51 = arith.constant 0 : index
    %242 = vector.load %arg11[%241, %c0_50, %c0_51] : memref<8x4x96xbf16, #tpu.memory_space<vmem>>, vector<1x4x96xbf16>
    %243 = vector.shape_cast %242 : vector<1x4x96xbf16> to vector<4x96xbf16>
    %244 = arith.extf %243 : vector<4x96xbf16> to vector<4x96xf32>
    %245 = vector.extract_strided_slice %244 {offsets = [0, 0], sizes = [4, 32], strides = [1, 1]} : vector<4x96xf32> to vector<4x32xf32>
    %246 = vector.extract_strided_slice %240 {offsets = [0, 0], sizes = [4, 32], strides = [1, 1]} : vector<4x96xf32> to vector<4x32xf32>
    %247 = arith.addf %245, %246 : vector<4x32xf32>
    %248 = arith.negf %247 : vector<4x32xf32>
    %249 = math.exp %248 : vector<4x32xf32>
    %cst_52 = arith.constant 1.000000e+00 : f32
    %250 = vector.broadcast %cst_52 : f32 to vector<4x32xf32>
    %251 = arith.addf %250, %249 : vector<4x32xf32>
    %252 = arith.divf %250, %251 : vector<4x32xf32>
    %253 = vector.extract_strided_slice %244 {offsets = [0, 32], sizes = [4, 32], strides = [1, 1]} : vector<4x96xf32> to vector<4x32xf32>
    %254 = vector.extract_strided_slice %240 {offsets = [0, 32], sizes = [4, 32], strides = [1, 1]} : vector<4x96xf32> to vector<4x32xf32>
    %255 = arith.addf %253, %254 : vector<4x32xf32>
    %256 = arith.negf %255 : vector<4x32xf32>
    %257 = math.exp %256 : vector<4x32xf32>
    %cst_53 = arith.constant 1.000000e+00 : f32
    %258 = vector.broadcast %cst_53 : f32 to vector<4x32xf32>
    %259 = arith.addf %258, %257 : vector<4x32xf32>
    %260 = arith.divf %258, %259 : vector<4x32xf32>
    %261 = vector.extract_strided_slice %244 {offsets = [0, 64], sizes = [4, 32], strides = [1, 1]} : vector<4x96xf32> to vector<4x32xf32>
    %262 = vector.extract_strided_slice %240 {offsets = [0, 64], sizes = [4, 32], strides = [1, 1]} : vector<4x96xf32> to vector<4x32xf32>
    %263 = vector.broadcast %14 : vector<1x32xf32> to vector<4x32xf32>
    %264 = arith.addf %262, %263 : vector<4x32xf32>
    %265 = arith.mulf %252, %264 : vector<4x32xf32>
    %266 = arith.addf %261, %265 : vector<4x32xf32>
    %267 = math.tanh %266 : vector<4x32xf32>
    %268 = arith.subf %238, %267 : vector<4x32xf32>
    %269 = arith.mulf %260, %268 : vector<4x32xf32>
    %270 = arith.addf %267, %269 : vector<4x32xf32>
    %271 = vector.broadcast %c6_i32 : i32 to vector<4x1xi32>
    %272 = arith.cmpi slt, %271, %15 : vector<4x1xi32>
    %273 = vector.shape_cast %272 : vector<4x1xi1> to vector<4x1xi1>
    %274 = vector.broadcast %273 : vector<4x1xi1> to vector<4x32xi1>
    %275 = arith.select %274, %270, %238 : vector<4x32xi1>, vector<4x32xf32>
    %c7_i32 = arith.constant 7 : i32
    %276 = arith.truncf %275 : vector<4x32xf32> to vector<4x32xbf16>
    %cst_54 = arith.constant dense<0.000000e+00> : vector<4x96xf32>
    %277 = tpu.matmul %276, %13, %cst_54 {dimension_numbers = #tpu.dot_dimension_numbers<[1], [0], [0], [1], [0, 0, 1, 1], [], []>} : vector<4x32xbf16>, vector<32x96xbf16>, vector<4x96xf32> -> vector<4x96xf32>
    %278 = arith.index_cast %c7_i32 : i32 to index
    %c0_55 = arith.constant 0 : index
    %c0_56 = arith.constant 0 : index
    %279 = vector.load %arg11[%278, %c0_55, %c0_56] : memref<8x4x96xbf16, #tpu.memory_space<vmem>>, vector<1x4x96xbf16>
    %280 = vector.shape_cast %279 : vector<1x4x96xbf16> to vector<4x96xbf16>
    %281 = arith.extf %280 : vector<4x96xbf16> to vector<4x96xf32>
    %282 = vector.extract_strided_slice %281 {offsets = [0, 0], sizes = [4, 32], strides = [1, 1]} : vector<4x96xf32> to vector<4x32xf32>
    %283 = vector.extract_strided_slice %277 {offsets = [0, 0], sizes = [4, 32], strides = [1, 1]} : vector<4x96xf32> to vector<4x32xf32>
    %284 = arith.addf %282, %283 : vector<4x32xf32>
    %285 = arith.negf %284 : vector<4x32xf32>
    %286 = math.exp %285 : vector<4x32xf32>
    %cst_57 = arith.constant 1.000000e+00 : f32
    %287 = vector.broadcast %cst_57 : f32 to vector<4x32xf32>
    %288 = arith.addf %287, %286 : vector<4x32xf32>
    %289 = arith.divf %287, %288 : vector<4x32xf32>
    %290 = vector.extract_strided_slice %281 {offsets = [0, 32], sizes = [4, 32], strides = [1, 1]} : vector<4x96xf32> to vector<4x32xf32>
    %291 = vector.extract_strided_slice %277 {offsets = [0, 32], sizes = [4, 32], strides = [1, 1]} : vector<4x96xf32> to vector<4x32xf32>
    %292 = arith.addf %290, %291 : vector<4x32xf32>
    %293 = arith.negf %292 : vector<4x32xf32>
    %294 = math.exp %293 : vector<4x32xf32>
    %cst_58 = arith.constant 1.000000e+00 : f32
    %295 = vector.broadcast %cst_58 : f32 to vector<4x32xf32>
    %296 = arith.addf %295, %294 : vector<4x32xf32>
    %297 = arith.divf %295, %296 : vector<4x32xf32>
    %298 = vector.extract_strided_slice %281 {offsets = [0, 64], sizes = [4, 32], strides = [1, 1]} : vector<4x96xf32> to vector<4x32xf32>
    %299 = vector.extract_strided_slice %277 {offsets = [0, 64], sizes = [4, 32], strides = [1, 1]} : vector<4x96xf32> to vector<4x32xf32>
    %300 = vector.broadcast %14 : vector<1x32xf32> to vector<4x32xf32>
    %301 = arith.addf %299, %300 : vector<4x32xf32>
    %302 = arith.mulf %289, %301 : vector<4x32xf32>
    %303 = arith.addf %298, %302 : vector<4x32xf32>
    %304 = math.tanh %303 : vector<4x32xf32>
    %305 = arith.subf %275, %304 : vector<4x32xf32>
    %306 = arith.mulf %297, %305 : vector<4x32xf32>
    %307 = arith.addf %304, %306 : vector<4x32xf32>
    %308 = vector.broadcast %c7_i32 : i32 to vector<4x1xi32>
    %309 = arith.cmpi slt, %308, %15 : vector<4x1xi32>
    %310 = vector.shape_cast %309 : vector<4x1xi1> to vector<4x1xi1>
    %311 = vector.broadcast %310 : vector<4x1xi1> to vector<4x32xi1>
    %312 = arith.select %311, %307, %275 : vector<4x32xi1>, vector<4x32xf32>
    %c8_i32 = arith.constant 8 : i32
    %313 = arith.truncf %312 : vector<4x32xf32> to vector<4x32xbf16>
    %c0_59 = arith.constant 0 : index
    %c0_60 = arith.constant 0 : index
    %314 = vector.load %arg8[%c0_59, %c0_60] : memref<32x32xbf16, #tpu.memory_space<vmem>>, vector<32x32xbf16>
    %cst_61 = arith.constant dense<0.000000e+00> : vector<4x32xf32>
    %315 = tpu.matmul %313, %314, %cst_61 {dimension_numbers = #tpu.dot_dimension_numbers<[1], [0], [0], [1], [0, 0, 1, 1], [], []>} : vector<4x32xbf16>, vector<32x32xbf16>, vector<4x32xf32> -> vector<4x32xf32>
    %c0_62 = arith.constant 0 : index
    %c0_63 = arith.constant 0 : index
    %316 = vector.load %arg9[%c0_62, %c0_63] : memref<1x32xf32, #tpu.memory_space<vmem>>, vector<1x32xf32>
    %317 = vector.broadcast %316 : vector<1x32xf32> to vector<4x32xf32>
    %318 = arith.addf %315, %317 : vector<4x32xf32>
    %319 = arith.mulf %318, %318 : vector<4x32xf32>
    %cst_64 = arith.constant dense<0.000000e+00> : vector<4xf32>
    %320 = vector.multi_reduction <add>, %319, %cst_64 [1] : vector<4x32xf32> to vector<4xf32>
    %321 = vector.shape_cast %320 : vector<4xf32> to vector<4x1xf32>
    %322 = math.sqrt %321 : vector<4x1xf32>
    %cst_65 = arith.constant 9.99999971E-10 : f32
    %323 = vector.broadcast %cst_65 : f32 to vector<4x1xf32>
    %324 = arith.addf %322, %323 : vector<4x1xf32>
    %325 = tpu.reciprocal %324 {approx = true} : vector<4x1xf32> -> vector<4x1xf32>
    %326 = vector.broadcast %325 : vector<4x1xf32> to vector<4x32xf32>
    %327 = arith.mulf %318, %326 : vector<4x32xf32>
    %c0_66 = arith.constant 0 : index
    %c0_67 = arith.constant 0 : index
    %328 = vector.load %arg10[%c0_66, %c0_67] : memref<4x32xf32, #tpu.memory_space<vmem>>, vector<4x32xf32>
    tpu.vector_store %arg10[%c0_66, %c0_67], %327 {strides = array<i32>} : memref<4x32xf32, #tpu.memory_space<vmem>>, vector<4x32xf32>,
    return
  }
  func.func @transform_0(%arg0: i32) -> (i32, i32) {
    %c0_i32 = arith.constant 0 : i32
    %c0_i32_0 = arith.constant 0 : i32
    return %arg0, %c0_i32 : i32, i32
  }
  func.func @transform_1(%arg0: i32) -> (i32, i32, i32) {
    %c0_i32 = arith.constant 0 : i32
    %c0_i32_0 = arith.constant 0 : i32
    %c0_i32_1 = arith.constant 0 : i32
    return %c0_i32, %arg0, %c0_i32_0 : i32, i32, i32
  }
  func.func @transform_2(%arg0: i32) -> (i32, i32) {
    %c0_i32 = arith.constant 0 : i32
    %c0_i32_0 = arith.constant 0 : i32
    %c0_i32_1 = arith.constant 0 : i32
    return %c0_i32, %c0_i32_0 : i32, i32
  }
  func.func @transform_3(%arg0: i32) -> (i32, i32) {
    %c0_i32 = arith.constant 0 : i32
    %c0_i32_0 = arith.constant 0 : i32
    %c0_i32_1 = arith.constant 0 : i32
    return %c0_i32, %c0_i32_0 : i32, i32
  }
  func.func @transform_4(%arg0: i32) -> (i32, i32) {
    %c0_i32 = arith.constant 0 : i32
    %c0_i32_0 = arith.constant 0 : i32
    %c0_i32_1 = arith.constant 0 : i32
    return %c0_i32, %c0_i32_0 : i32, i32
  }
  func.func @transform_5(%arg0: i32) -> (i32, i32) {
    %c0_i32 = arith.constant 0 : i32
    %c0_i32_0 = arith.constant 0 : i32
    %c0_i32_1 = arith.constant 0 : i32
    return %c0_i32, %c0_i32_0 : i32, i32
  }
  func.func @transform_6(%arg0: i32) -> (i32, i32) {
    %c0_i32 = arith.constant 0 : i32
    %c0_i32_0 = arith.constant 0 : i32
    %c0_i32_1 = arith.constant 0 : i32
    return %c0_i32, %c0_i32_0 : i32, i32
  }
  func.func @transform_7(%arg0: i32) -> (i32, i32) {
    %c0_i32 = arith.constant 0 : i32
    %c0_i32_0 = arith.constant 0 : i32
    %c0_i32_1 = arith.constant 0 : i32
    return %c0_i32, %c0_i32_0 : i32, i32
  }
  func.func @transform_8(%arg0: i32) -> (i32, i32) {
    %c0_i32 = arith.constant 0 : i32
    %c0_i32_0 = arith.constant 0 : i32
    %c0_i32_1 = arith.constant 0 : i32
    return %c0_i32, %c0_i32_0 : i32, i32
  }
  func.func @transform_9(%arg0: i32) -> (i32, i32) {
    %c0_i32 = arith.constant 0 : i32
    %c0_i32_0 = arith.constant 0 : i32
    return %arg0, %c0_i32 : i32, i32
  }
}

</mosaic_0001>

<llo_original>
// kernel: tpu_custom_call.1
$region0: #{tpu_custom_call.1}
  #allocation0 [shape = 'u32[]', space=smem, size = 0x4, offset = 0x4, fixed_abs, tag = 'smem constant byte address 0x4 - core index']
  #allocation1 [shape = 'u32[144,128]{1,0:T(1,128)}', space=vmem, size = 0x12000, scoped, tag = 'internal scratch']
  #allocation2 [shape = 'bf16[8,4,96]{2,1,0:T(4,128)(2,1)}', space=vmem, size = 0x2000, scoped, tag = 'scratch operand']
  %s0 = inlined_call_operand.vmem [shape: s32[4,1], index: 0, kind: input, shape index: {}]
  %s1 = inlined_call_operand.hbm [shape: bf16[8,4,24], index: 1, kind: input, shape index: {}]
  %s2 = inlined_call_operand.hbm [shape: bf16[24,32], index: 2, kind: input, shape index: {}]
  %s3 = inlined_call_operand.hbm [shape: bf16[32,96], index: 3, kind: input, shape index: {}]
  %s4 = inlined_call_operand.hbm [shape: bf16[32,96], index: 4, kind: input, shape index: {}]
  %s5 = inlined_call_operand.vmem [shape: f32[1,96], index: 5, kind: input, shape index: {}]
  %s6 = inlined_call_operand.hbm [shape: f32[1,32], index: 6, kind: input, shape index: {}]
  %s7 = inlined_call_operand.vmem [shape: bf16[32,32], index: 7, kind: input, shape index: {}]
  %s8 = inlined_call_operand.vmem [shape: f32[1,32], index: 8, kind: input, shape index: {}]
  %s9 = inlined_call_operand.hbm [shape: f32[4,32], index: 9, kind: output, shape index: {}]
  %s10 = sld [smem:[#allocation0]]
  $region66: #{tpu_custom_call.1} parent=0
    _
  %s12 = ssub.s32 1, %s10
  %s13 = scalar_select 0, %s12, %s10
  $region1: #{tpu_custom_call.1} parent=0
    #allocation3 [shape = 'u8[8192]{0}', space=vmem, size = 0x2000, scoped, tag = 'input window, operand 1, single buffered']
    #allocation4 [shape = 's32[1]{0}', space=sflag, size = 0x4, scoped, tag = 'scoped memory for tpu_custom_call.1']
    #allocation5 [shape = 's32[1]{0}', space=sflag, size = 0x4, scoped, tag = 'scoped memory for tpu_custom_call.1']
    #allocation6 [shape = 'u8[6144]{0}', space=vmem, size = 0x1800, scoped, tag = 'input window, operand 2, single buffered']
    #allocation7 [shape = 's32[1]{0}', space=sflag, size = 0x4, scoped, tag = 'scoped memory for tpu_custom_call.1']
    #allocation8 [shape = 'u8[8192]{0}', space=vmem, size = 0x2000, scoped, tag = 'input window, operand 3, single buffered']
    #allocation9 [shape = 'u8[8192]{0}', space=vmem, size = 0x2000, scoped, tag = 'input window, operand 4, single buffered']
    #allocation10 [shape = 's32[1]{0}', space=sflag, size = 0x4, scoped, tag = 'scoped memory for tpu_custom_call.1']
    #allocation11 [shape = 'u8[512]{0}', space=vmem, size = 0x400, scoped, tag = 'input window, operand 6, single buffered']
    #allocation12 [shape = 'u8[2048]{0}', space=vmem, size = 0x800, scoped, tag = 'output window, operand 0, single buffered']
    %14 = vsyncpa [#allocation4], 0
    %15 = vsyncpa [#allocation7], 0
    %16 = vsyncpa [#allocation10], 0
    %17 = vsyncpa [#allocation5], 0
    // Predicated region
    $region2: #{tpu_custom_call.1} parent=1 // pred_check
      _
    $region3: #{tpu_custom_call.1} parent=1 // pred_check_branch
      %19 = sbr.rel (0) target = $region5
    $region4: #{tpu_custom_call.1} parent=1 // pred_region
      _
    $region5: #{tpu_custom_call.1} parent=1 // pred_fallthru
      _
    // Predicated region
    $region6: #{tpu_custom_call.1} parent=1 // pred_check
      _
    $region7: #{tpu_custom_call.1} parent=1 // pred_check_branch
      %21 = sbr.rel (0) target = $region9
    $region8: #{tpu_custom_call.1} parent=1 // pred_region
      %s23 = ssub.s32 256, 256
      %24 = vsyncadd [#allocation4], %s23
      %s25 = sshll.u32 [#allocation3], 4
      %s26 = int_to_ptr.vmem [resolvable:$true] %s25
      %31 = dma.hbm_to_vmem [thread:$0]  %s1, 256, %s26, [#allocation4], 32, 32, 2
    $region9: #{tpu_custom_call.1} parent=1 // pred_fallthru
      _
    // Predicated region
    $region10: #{tpu_custom_call.1} parent=1 // pred_check
      _
    $region11: #{tpu_custom_call.1} parent=1 // pred_check_branch
      %33 = sbr.rel (0) target = $region13
    $region12: #{tpu_custom_call.1} parent=1 // pred_region
      %s35 = ssub.s32 192, 192
      %36 = vsyncadd [#allocation7], %s35
      %s37 = sshll.u32 [#allocation6], 4
      %s38 = int_to_ptr.vmem [resolvable:$true] %s37
      %43 = dma.hbm_to_vmem [thread:$0]  %s2, 192, %s38, [#allocation7], 64, 64, 4
    $region13: #{tpu_custom_call.1} parent=1 // pred_fallthru
      _
    // Predicated region
    $region14: #{tpu_custom_call.1} parent=1 // pred_check
      _
    $region15: #{tpu_custom_call.1} parent=1 // pred_check_branch
      %45 = sbr.rel (0) target = $region17
    $region16: #{tpu_custom_call.1} parent=1 // pred_region
      %s47 = ssub.s32 256, 256
      %48 = vsyncadd [#allocation7], %s47
      %s49 = sshll.u32 [#allocation8], 4
      %s50 = int_to_ptr.vmem [resolvable:$true] %s49
      %55 = dma.hbm_to_vmem [thread:$0]  %s3, 256, %s50, [#allocation7], 64, 64, 4
    $region17: #{tpu_custom_call.1} parent=1 // pred_fallthru
      _
    // Predicated region
    $region18: #{tpu_custom_call.1} parent=1 // pred_check
      _
    $region19: #{tpu_custom_call.1} parent=1 // pred_check_branch
      %57 = sbr.rel (0) target = $region21
    $region20: #{tpu_custom_call.1} parent=1 // pred_region
      %s59 = ssub.s32 256, 256
      %60 = vsyncadd [#allocation10], %s59
      %s61 = sshll.u32 [#allocation9], 4
      %s62 = int_to_ptr.vmem [resolvable:$true] %s61
      %67 = dma.hbm_to_vmem [thread:$0]  %s4, 256, %s62, [#allocation10], 64, 64, 4
    $region21: #{tpu_custom_call.1} parent=1 // pred_fallthru
      _
    // Predicated region
    $region22: #{tpu_custom_call.1} parent=1 // pred_check
      _
    $region23: #{tpu_custom_call.1} parent=1 // pred_check_branch
      %69 = sbr.rel (0) target = $region25
    $region24: #{tpu_custom_call.1} parent=1 // pred_region
      _
    $region25: #{tpu_custom_call.1} parent=1 // pred_fallthru
      _
    // Predicated region
    $region26: #{tpu_custom_call.1} parent=1 // pred_check
      _
    $region27: #{tpu_custom_call.1} parent=1 // pred_check_branch
      %71 = sbr.rel (0) target = $region29
    $region28: #{tpu_custom_call.1} parent=1 // pred_region
      %s73 = ssub.s32 16, 16
      %74 = vsyncadd [#allocation10], %s73
      %s76 = sshll.u32 [#allocation11], 4
      %s77 = int_to_ptr.vmem [resolvable:$true] %s76
      %79 = dma.hbm_to_vmem [thread:$0]  %s6, 16, %s77, [#allocation10]
    $region29: #{tpu_custom_call.1} parent=1 // pred_fallthru
      _
    // Predicated region
    $region30: #{tpu_custom_call.1} parent=1 // pred_check
      _
    $region31: #{tpu_custom_call.1} parent=1 // pred_check_branch
      %81 = sbr.rel (0) target = $region33
    $region32: #{tpu_custom_call.1} parent=1 // pred_region
      _
    $region33: #{tpu_custom_call.1} parent=1 // pred_fallthru
      _
    // Predicated region
    $region34: #{tpu_custom_call.1} parent=1 // pred_check
      _
    $region35: #{tpu_custom_call.1} parent=1 // pred_check_branch
      %83 = sbr.rel (0) target = $region37
    $region36: #{tpu_custom_call.1} parent=1 // pred_region
      _
    $region37: #{tpu_custom_call.1} parent=1 // pred_fallthru
      _
    // Predicated region
    $region38: #{tpu_custom_call.1} parent=1 // pred_check
      _
    $region39: #{tpu_custom_call.1} parent=1 // pred_check_branch
      %85 = sbr.rel (0) target = $region41
    $region40: #{tpu_custom_call.1} parent=1 // pred_region
      %86 = dma.done [#allocation4], 256
    $region41: #{tpu_custom_call.1} parent=1 // pred_fallthru
      _
    // Predicated region
    $region42: #{tpu_custom_call.1} parent=1 // pred_check
      _
    $region43: #{tpu_custom_call.1} parent=1 // pred_check_branch
      %88 = sbr.rel (0) target = $region45
    $region44: #{tpu_custom_call.1} parent=1 // pred_region
      %89 = dma.done [#allocation7], 192
    $region45: #{tpu_custom_call.1} parent=1 // pred_fallthru
      _
    // Predicated region
    $region46: #{tpu_custom_call.1} parent=1 // pred_check
      _
    $region47: #{tpu_custom_call.1} parent=1 // pred_check_branch
      %91 = sbr.rel (0) target = $region49
    $region48: #{tpu_custom_call.1} parent=1 // pred_region
      %92 = dma.done [#allocation7], 256
    $region49: #{tpu_custom_call.1} parent=1 // pred_fallthru
      _
    // Predicated region
    $region50: #{tpu_custom_call.1} parent=1 // pred_check
      _
    $region51: #{tpu_custom_call.1} parent=1 // pred_check_branch
      %94 = sbr.rel (0) target = $region53
    $region52: #{tpu_custom_call.1} parent=1 // pred_region
      %95 = dma.done [#allocation10], 256
    $region53: #{tpu_custom_call.1} parent=1 // pred_fallthru
      _
    // Predicated region
    $region54: #{tpu_custom_call.1} parent=1 // pred_check
      _
    $region55: #{tpu_custom_call.1} parent=1 // pred_check_branch
      %97 = sbr.rel (0) target = $region57
    $region56: #{tpu_custom_call.1} parent=1 // pred_region
      %98 = dma.done [#allocation10], 16
    $region57: #{tpu_custom_call.1} parent=1 // pred_fallthru
      _
    %v100 = vld [vmem:[#allocation3] sm:$0x3]
    %v101 = vld [vmem:[#allocation3 + $0x2] sm:$0x3]
    %v102 = vld [vmem:[#allocation3 + $0x4] sm:$0x3]
    %v103 = vld [vmem:[#allocation3 + $0x6] sm:$0x3]
    %v104 = vld [vmem:[#allocation3 + $0x8] sm:$0x3]
    %v105 = vld [vmem:[#allocation3 + $0xa] sm:$0x3]
    %v106 = vld [vmem:[#allocation3 + $0xc] sm:$0x3]
    %v107 = vld [vmem:[#allocation3 + $0xe] sm:$0x3]
    %v108 = vld [vmem:[#allocation6] sm:$0xf]
    %v109 = vld [vmem:[#allocation6 + $0x4] sm:$0xf]
    %v110 = vld [vmem:[#allocation6 + $0x8] sm:$0xf]
    %v119 = vcombine.low %v100, %v101
    %v120 = vcombine.low %v102, %v103
    %v122 = vunpack.c.l.s4 1983009808
    %v123 = vunpack.c.0.s8 %v122
    %v124 = vlaneseq
    %v125 = vshrl.u32 %v124, 7
    %v126 = vsub.s32 %v123, %v125
    %v127 = vrot.slane %v119, %v126
    %v129 = vunpack.c.l.s4 1983009808
    %v130 = vunpack.c.0.s8 %v129
    %v131 = vlaneseq
    %v132 = vshrl.u32 %v131, 7
    %v133 = vsub.s32 %v130, %v132
    %v134 = vrot.slane %v120, %v133
    %v135 = vcombine.low %v127, %v134
    %v136 = vcombine.low %v104, %v105
    %v137 = vcombine.low %v106, %v107
    %v139 = vunpack.c.l.s4 1983009808
    %v140 = vunpack.c.0.s8 %v139
    %v141 = vlaneseq
    %v142 = vshrl.u32 %v141, 7
    %v143 = vsub.s32 %v140, %v142
    %v144 = vrot.slane %v136, %v143
    %v146 = vunpack.c.l.s4 1983009808
    %v147 = vunpack.c.0.s8 %v146
    %v148 = vlaneseq
    %v149 = vshrl.u32 %v148, 7
    %v150 = vsub.s32 %v147, %v149
    %v151 = vrot.slane %v137, %v150
    %v152 = vcombine.low %v144, %v151
    %v156 = vunpack.c.l.b16 %v108
    %v157 = vunpack.c.l.b16 %v109
    %v158 = vunpack.c.l.b16 %v110
    %v159 = vpack.c.b16 %v157, %v156
    %v160 = vpack.c.b16 %v158, %v158
    %vm162 = vcmask 195584
    %v164 = vsel %vm162, %v135, 0
    %v167 = vsel %vm162, %v152, 0
    %vm169 = vcmask 1043456
    %v171 = vsel %vm169, %v160, 0
    %173 = vmatprep.subr.bf16.mxu0 0
    %174 = vmatpush1.bf16.msra.mxu0 0
    %175 = vmatprep.subr.bf16.mxu0 0
    %176 = vmatpush1.bf16.msra.mxu0 0
    %177 = vmatprep.subr.bf16.mxu0 0
    %178 = vmatpush1.bf16.msra.mxu0 0
    %179 = vmatprep.subr.bf16.mxu0 0
    %180 = vmatpush1.bf16.msra.mxu0 0
    %181 = vmatprep.subr.bf16.mxu0 0
    %182 = vmatpush1.bf16.msra.mxu0 0
    %183 = vmatprep.subr.bf16.mxu0 0
    %184 = vmatpush1.bf16.msra.mxu0 0
    %185 = vmatprep.subr.bf16.mxu0 0
    %186 = vmatpush1.bf16.msra.mxu0 %v171
    %187 = vmatprep.subr.bf16.mxu0 0
    %188 = vmatpush1.bf16.msra.mxu0 %v159
    %189 = vmatprep.subr.bf16.mxu0 0
    %190 = vmatpush2.bf16.msra.mxu0 0
    %191 = vmatprep.subr.bf16.mxu0 0
    %192 = vmatpush2.bf16.msra.mxu0 0
    %193 = vmatprep.subr.bf16.mxu0 0
    %194 = vmatpush2.bf16.msra.mxu0 0
    %195 = vmatprep.subr.bf16.mxu0 0
    %196 = vmatpush2.bf16.msra.mxu0 0
    %197 = vmatprep.subr.bf16.mxu0 0
    %198 = vmatpush2.bf16.msra.mxu0 0
    %199 = vmatprep.subr.bf16.mxu0 0
    %200 = vmatpush2.bf16.msra.mxu0 0
    %201 = vmatprep.subr.bf16.mxu0 0
    %202 = vmatpush2.bf16.msra.mxu0 0
    %203 = vmatprep.subr.bf16.mxu0 0
    %204 = vmatpush2.bf16.msra.mxu0 0
    %205 = vmatprep.mubr.bf16.mxu0 0
    %206 = vmatmul.mubr.bf16.gmra.mxu0 %v164
    %v207 = vpop.f32.mrf.mxu0
    %v208 = vadd.f32 0.0, %v207
    %v209 = vpop.f32.mrf.mxu0
    %v210 = vpop.f32.mrf.mxu0
    %v211 = vadd.f32 0.0, %v210
    %v212 = vpop.f32.mrf.mxu0
    %213 = vmatprep.mubr.bf16.mxu0 0
    %214 = vmatmul.mubr.bf16.gmra.mxu0 %v167
    %v215 = vpop.f32.mrf.mxu0
    %v216 = vadd.f32 0.0, %v215
    %v217 = vpop.f32.mrf.mxu0
    %v218 = vpop.f32.mrf.mxu0
    %v219 = vadd.f32 0.0, %v218
    %v220 = vpop.f32.mrf.mxu0
    %221 = vdwg.mxu0
    %v222 = vpack.c.bf16 %v211, %v208
    %v223 = vpack.c.bf16 %v219, %v216
    %v224 = vld [vmem:[#allocation8] sm:$0xf]
    %v225 = vld [vmem:[#allocation8 + $0x4] sm:$0xf]
    %v226 = vld [vmem:[#allocation8 + $0x8] sm:$0xf]
    %v227 = vld [vmem:[#allocation8 + $0xc] sm:$0xf]
    %v228 = vld [vmem:[%s5] sm:$0x1]
    %v230 = vlaneseq
    %v231 = vshrl.u32 %v230, 7
    %v232 = vsub.s32 0, %v231
    %v233 = vrot.slane %v228, %v232
    %v239 = vunpack.c.l.b16 %v224
    %v240 = vunpack.c.l.b16 %v225
    %v241 = vunpack.c.l.b16 %v226
    %v242 = vunpack.c.l.b16 %v227
    %v243 = vpack.c.b16 %v240, %v239
    %v244 = vpack.c.b16 %v242, %v241
    %vm247 = vcmask 261120
    %v249 = vsel %vm247, %v222, 0
    %v252 = vsel %vm247, %v223, 0
    %254 = vmatprep.subr.bf16.mxu0 0
    %255 = vmatpush1.bf16.msra.mxu0 0
    %256 = vmatprep.subr.bf16.mxu0 0
    %257 = vmatpush1.bf16.msra.mxu0 0
    %258 = vmatprep.subr.bf16.mxu0 0
    %259 = vmatpush1.bf16.msra.mxu0 0
    %260 = vmatprep.subr.bf16.mxu0 0
    %261 = vmatpush1.bf16.msra.mxu0 0
    %262 = vmatprep.subr.bf16.mxu0 0
    %263 = vmatpush1.bf16.msra.mxu0 0
    %264 = vmatprep.subr.bf16.mxu0 0
    %265 = vmatpush1.bf16.msra.mxu0 0
    %266 = vmatprep.subr.bf16.mxu0 0
    %267 = vmatpush1.bf16.msra.mxu0 %v244
    %268 = vmatprep.subr.bf16.mxu0 0
    %269 = vmatpush1.bf16.msra.mxu0 %v243
    %270 = vmatprep.subr.bf16.mxu0 0
    %271 = vmatpush2.bf16.msra.mxu0 0
    %272 = vmatprep.subr.bf16.mxu0 0
    %273 = vmatpush2.bf16.msra.mxu0 0
    %274 = vmatprep.subr.bf16.mxu0 0
    %275 = vmatpush2.bf16.msra.mxu0 0
    %276 = vmatprep.subr.bf16.mxu0 0
    %277 = vmatpush2.bf16.msra.mxu0 0
    %278 = vmatprep.subr.bf16.mxu0 0
    %279 = vmatpush2.bf16.msra.mxu0 0
    %280 = vmatprep.subr.bf16.mxu0 0
    %281 = vmatpush2.bf16.msra.mxu0 0
    %282 = vmatprep.subr.bf16.mxu0 0
    %283 = vmatpush2.bf16.msra.mxu0 0
    %284 = vmatprep.subr.bf16.mxu0 0
    %285 = vmatpush2.bf16.msra.mxu0 0
    %286 = vmatprep.mubr.bf16.mxu0 0
    %287 = vmatmul.mubr.bf16.gmra.mxu0 %v249
    %v288 = vpop.f32.mrf.mxu0
    %v289 = vadd.f32 %v233, %v288
    %v290 = vpop.f32.mrf.mxu0
    %v291 = vpop.f32.mrf.mxu0
    %v292 = vadd.f32 %v233, %v291
    %v293 = vpop.f32.mrf.mxu0
    %294 = vmatprep.mubr.bf16.mxu0 0
    %295 = vmatmul.mubr.bf16.gmra.mxu0 %v252
    %v296 = vpop.f32.mrf.mxu0
    %v297 = vadd.f32 %v233, %v296
    %v298 = vpop.f32.mrf.mxu0
    %v299 = vpop.f32.mrf.mxu0
    %v300 = vadd.f32 %v233, %v299
    %v301 = vpop.f32.mrf.mxu0
    %302 = vdwg.mxu0
    %v307 = vcombine.high %v289, %v289
    %v308 = vcombine.high %v292, %v292
    %v309 = vcombine.high %v297, %v297
    %v310 = vcombine.high %v300, %v300
    %v315 = vpack.c.bf16 %v289, %v289
    %v316 = vpack.c.bf16 %v307, %v307
    %v317 = vpack.c.bf16 %v292, %v292
    %v318 = vpack.c.bf16 %v308, %v308
    %v319 = vpack.c.bf16 %v297, %v297
    %v320 = vpack.c.bf16 %v309, %v309
    %v321 = vpack.c.bf16 %v300, %v300
    %v322 = vpack.c.bf16 %v310, %v310
    %vm323 = vcmask 779264
    %324 = vst.msk [vmem:[#allocation2] sm:$0x3] %vm323, %v315
    %325 = vst.msk [vmem:[#allocation2 + $0x2] sm:$0x3] %vm323, %v316
    %326 = vst.msk [vmem:[#allocation2 + $0x4] sm:$0x3] %vm323, %v317
    %327 = vst.msk [vmem:[#allocation2 + $0x6] sm:$0x3] %vm323, %v318
    %328 = vst.msk [vmem:[#allocation2 + $0x8] sm:$0x3] %vm323, %v319
    %329 = vst.msk [vmem:[#allocation2 + $0xa] sm:$0x3] %vm323, %v320
    %330 = vst.msk [vmem:[#allocation2 + $0xc] sm:$0x3] %vm323, %v321
    %331 = vst.msk [vmem:[#allocation2 + $0xe] sm:$0x3] %vm323, %v322
    %v332 = vld [vmem:[#allocation9] sm:$0xf]
    %v333 = vld [vmem:[#allocation9 + $0x4] sm:$0xf]
    %v334 = vld [vmem:[#allocation9 + $0x8] sm:$0xf]
    %v335 = vld [vmem:[#allocation9 + $0xc] sm:$0xf]
    %v336 = vld [vmem:[#allocation11] sm:$0x1]
    %v337 = vld [vmem:[%s0] sm:$0xf]
    %v342 = vunpack.c.l.b16 %v332
    %v343 = vunpack.c.l.b16 %v333
    %v344 = vunpack.c.l.b16 %v334
    %v345 = vunpack.c.l.b16 %v335
    %v346 = vpack.c.b16 %v343, %v342
    %v347 = vpack.c.b16 %v345, %v344
    %v351 = vsel %vm247, 0, 0
    %353 = vmatprep.subr.bf16.mxu0 0
    %354 = vmatpush1.bf16.msra.mxu0 0
    %355 = vmatprep.subr.bf16.mxu0 0
    %356 = vmatpush1.bf16.msra.mxu0 0
    %357 = vmatprep.subr.bf16.mxu0 0
    %358 = vmatpush1.bf16.msra.mxu0 0
    %359 = vmatprep.subr.bf16.mxu0 0
    %360 = vmatpush1.bf16.msra.mxu0 0
    %361 = vmatprep.subr.bf16.mxu0 0
    %362 = vmatpush1.bf16.msra.mxu0 0
    %363 = vmatprep.subr.bf16.mxu0 0
    %364 = vmatpush1.bf16.msra.mxu0 0
    %365 = vmatprep.subr.bf16.mxu0 0
    %366 = vmatpush1.bf16.msra.mxu0 %v347
    %367 = vmatprep.subr.bf16.mxu0 0
    %368 = vmatpush1.bf16.msra.mxu0 %v346
    %369 = vmatprep.subr.bf16.mxu0 0
    %370 = vmatpush2.bf16.msra.mxu0 0
    %371 = vmatprep.subr.bf16.mxu0 0
    %372 = vmatpush2.bf16.msra.mxu0 0
    %373 = vmatprep.subr.bf16.mxu0 0
    %374 = vmatpush2.bf16.msra.mxu0 0
    %375 = vmatprep.subr.bf16.mxu0 0
    %376 = vmatpush2.bf16.msra.mxu0 0
    %377 = vmatprep.subr.bf16.mxu0 0
    %378 = vmatpush2.bf16.msra.mxu0 0
    %379 = vmatprep.subr.bf16.mxu0 0
    %380 = vmatpush2.bf16.msra.mxu0 0
    %381 = vmatprep.subr.bf16.mxu0 0
    %382 = vmatpush2.bf16.msra.mxu0 0
    %383 = vmatprep.subr.bf16.mxu0 0
    %384 = vmatpush2.bf16.msra.mxu0 0
    %385 = vmatprep.mubr.bf16.mxu0 0
    %386 = vmatmul.mubr.bf16.gmra.mxu0 %v351
    %v387 = vpop.f32.mrf.mxu0
    %v388 = vadd.f32 0.0, %v387
    %v389 = vpop.f32.mrf.mxu0
    %v390 = vpop.f32.mrf.mxu0
    %v391 = vpop.f32.mrf.mxu0
    %392 = vdwg.mxu0
    %v393 = vld [vmem:[#allocation2] sm:$0x3]
    %v394 = vunpack.c.l.bf16 %v393
    %v395 = vadd.f32 %v394, %v388
    %v396 = vxor.u32 %v395, 2147483648
    %v397 = vmul.f32 %v396, 1.442695
    %v398 = vpow.pop %v397
    %v399 = vadd.f32 %v398, 1.0
    %v400 = vrcp.pop %v399
    %v401 = vmul.f32 1.0, %v400
    %v403 = vlaneseq
    %v404 = vshrl.u32 %v403, 7
    %v405 = vsub.s32 0, %v404
    %v406 = vrot.slane %v336, %v405
    %407 = vrot.lane.b32.xlu0 %v406, 64
    %v408 = vpop.permute.xlu0 %407
    %v410 = vadd.f32 %v388, %v408
    %412 = vrot.lane.b32.xlu0 %v410, 64
    %v413 = vpop.permute.xlu0 %412
    %v415 = vmul.f32 %v401, %v413
    %417 = vrot.lane.b32.xlu0 %v415, 64
    %v418 = vpop.permute.xlu0 %417
    %v420 = vadd.f32 %v394, %v418
    %v421 = vtanh.pop %v420
    %v422 = vsub.f32 0.0, %v421
    %424 = vrot.lane.b32.xlu0 %v422, 96
    %v425 = vpop.permute.xlu0 %424
    %v427 = vmul.f32 %v401, %v425
    %429 = vrot.lane.b32.xlu0 %v427, 32
    %v430 = vpop.permute.xlu0 %429
    %v432 = vadd.f32 %v421, %v430
    %vm433 = vcmp.gt.s32.totalorder %v337, 0
    %v434 = vsel %vm433, 1, 0
    %435 = vset.pattern.permute.xlu0 0
    %436 = vperm.xlu0 %435, %v434
    %v437 = vpop.permute.xlu0 %436
    %vm438 = vcmp.eq.s32.totalorder %v437, 1
    %440 = vrot.lane.b32.xlu0 %v432, 64
    %v441 = vpop.permute.xlu0 %440
    %v443 = vsel %vm438, %v441, 0.0
    %v444 = vpack.c.bf16 %v443, %v443
    %v446 = vsel %vm247, %v444, 0
    %448 = vmatprep.subr.bf16.mxu0 0
    %449 = vmatpush1.bf16.msra.mxu0 0
    %450 = vmatprep.subr.bf16.mxu0 0
    %451 = vmatpush1.bf16.msra.mxu0 0
    %452 = vmatprep.subr.bf16.mxu0 0
    %453 = vmatpush1.bf16.msra.mxu0 0
    %454 = vmatprep.subr.bf16.mxu0 0
    %455 = vmatpush1.bf16.msra.mxu0 0
    %456 = vmatprep.subr.bf16.mxu0 0
    %457 = vmatpush1.bf16.msra.mxu0 0
    %458 = vmatprep.subr.bf16.mxu0 0
    %459 = vmatpush1.bf16.msra.mxu0 0
    %460 = vmatprep.subr.bf16.mxu0 0
    %461 = vmatpush1.bf16.msra.mxu0 %v347
    %462 = vmatprep.subr.bf16.mxu0 0
    %463 = vmatpush1.bf16.msra.mxu0 %v346
    %464 = vmatprep.subr.bf16.mxu0 0
    %465 = vmatpush2.bf16.msra.mxu0 0
    %466 = vmatprep.subr.bf16.mxu0 0
    %467 = vmatpush2.bf16.msra.mxu0 0
    %468 = vmatprep.subr.bf16.mxu0 0
    %469 = vmatpush2.bf16.msra.mxu0 0
    %470 = vmatprep.subr.bf16.mxu0 0
    %471 = vmatpush2.bf16.msra.mxu0 0
    %472 = vmatprep.subr.bf16.mxu0 0
    %473 = vmatpush2.bf16.msra.mxu0 0
    %474 = vmatprep.subr.bf16.mxu0 0
    %475 = vmatpush2.bf16.msra.mxu0 0
    %476 = vmatprep.subr.bf16.mxu0 0
    %477 = vmatpush2.bf16.msra.mxu0 0
    %478 = vmatprep.subr.bf16.mxu0 0
    %479 = vmatpush2.bf16.msra.mxu0 0
    %480 = vmatprep.mubr.bf16.mxu0 0
    %481 = vmatmul.mubr.bf16.gmra.mxu0 %v446
    %v482 = vpop.f32.mrf.mxu0
    %v483 = vadd.f32 0.0, %v482
    %v484 = vpop.f32.mrf.mxu0
    %v485 = vpop.f32.mrf.mxu0
    %v486 = vpop.f32.mrf.mxu0
    %487 = vdwg.mxu0
    %s488 = scalar_lea.vmem [#allocation2], 2
    %v489 = vld [vmem:[%s488] sm:$0x3]
    %v490 = vunpack.c.l.bf16 %v489
    %v491 = vadd.f32 %v490, %v483
    %v492 = vxor.u32 %v491, 2147483648
    %v493 = vmul.f32 %v492, 1.442695
    %v494 = vpow.pop %v493
    %v495 = vadd.f32 %v494, 1.0
    %v496 = vrcp.pop %v495
    %v497 = vmul.f32 1.0, %v496
    %v498 = vadd.f32 %v483, %v408
    %500 = vrot.lane.b32.xlu0 %v498, 64
    %v501 = vpop.permute.xlu0 %500
    %v503 = vmul.f32 %v497, %v501
    %505 = vrot.lane.b32.xlu0 %v503, 64
    %v506 = vpop.permute.xlu0 %505
    %v508 = vadd.f32 %v490, %v506
    %v509 = vtanh.pop %v508
    %511 = vrot.lane.b32.xlu0 %v509, 64
    %v512 = vpop.permute.xlu0 %511
    %v514 = vsub.f32 %v443, %v512
    %516 = vrot.lane.b32.xlu0 %v514, 32
    %v517 = vpop.permute.xlu0 %516
    %v519 = vmul.f32 %v497, %v517
    %521 = vrot.lane.b32.xlu0 %v519, 32
    %v522 = vpop.permute.xlu0 %521
    %v524 = vadd.f32 %v509, %v522
    %vm525 = vcmp.gt.s32.totalorder %v337, 1
    %v526 = vsel %vm525, 1, 0
    %527 = vset.pattern.permute.xlu0 0
    %528 = vperm.xlu0 %527, %v526
    %v529 = vpop.permute.xlu0 %528
    %vm530 = vcmp.eq.s32.totalorder %v529, 1
    %532 = vrot.lane.b32.xlu0 %v524, 64
    %v533 = vpop.permute.xlu0 %532
    %v535 = vsel %vm530, %v533, %v443
    %v536 = vpack.c.bf16 %v535, %v535
    %v538 = vsel %vm247, %v536, 0
    %540 = vmatprep.subr.bf16.mxu0 0
    %541 = vmatpush1.bf16.msra.mxu0 0
    %542 = vmatprep.subr.bf16.mxu0 0
    %543 = vmatpush1.bf16.msra.mxu0 0
    %544 = vmatprep.subr.bf16.mxu0 0
    %545 = vmatpush1.bf16.msra.mxu0 0
    %546 = vmatprep.subr.bf16.mxu0 0
    %547 = vmatpush1.bf16.msra.mxu0 0
    %548 = vmatprep.subr.bf16.mxu0 0
    %549 = vmatpush1.bf16.msra.mxu0 0
    %550 = vmatprep.subr.bf16.mxu0 0
    %551 = vmatpush1.bf16.msra.mxu0 0
    %552 = vmatprep.subr.bf16.mxu0 0
    %553 = vmatpush1.bf16.msra.mxu0 %v347
    %554 = vmatprep.subr.bf16.mxu0 0
    %555 = vmatpush1.bf16.msra.mxu0 %v346
    %556 = vmatprep.subr.bf16.mxu0 0
    %557 = vmatpush2.bf16.msra.mxu0 0
    %558 = vmatprep.subr.bf16.mxu0 0
    %559 = vmatpush2.bf16.msra.mxu0 0
    %560 = vmatprep.subr.bf16.mxu0 0
    %561 = vmatpush2.bf16.msra.mxu0 0
    %562 = vmatprep.subr.bf16.mxu0 0
    %563 = vmatpush2.bf16.msra.mxu0 0
    %564 = vmatprep.subr.bf16.mxu0 0
    %565 = vmatpush2.bf16.msra.mxu0 0
    %566 = vmatprep.subr.bf16.mxu0 0
    %567 = vmatpush2.bf16.msra.mxu0 0
    %568 = vmatprep.subr.bf16.mxu0 0
    %569 = vmatpush2.bf16.msra.mxu0 0
    %570 = vmatprep.subr.bf16.mxu0 0
    %571 = vmatpush2.bf16.msra.mxu0 0
    %572 = vmatprep.mubr.bf16.mxu0 0
    %573 = vmatmul.mubr.bf16.gmra.mxu0 %v538
    %v574 = vpop.f32.mrf.mxu0
    %v575 = vadd.f32 0.0, %v574
    %v576 = vpop.f32.mrf.mxu0
    %v577 = vpop.f32.mrf.mxu0
    %v578 = vpop.f32.mrf.mxu0
    %579 = vdwg.mxu0
    %s580 = scalar_lea.vmem [#allocation2], 4
    %v581 = vld [vmem:[%s580] sm:$0x3]
    %v582 = vunpack.c.l.bf16 %v581
    %v583 = vadd.f32 %v582, %v575
    %v584 = vxor.u32 %v583, 2147483648
    %v585 = vmul.f32 %v584, 1.442695
    %v586 = vpow.pop %v585
    %v587 = vadd.f32 %v586, 1.0
    %v588 = vrcp.pop %v587
    %v589 = vmul.f32 1.0, %v588
    %v590 = vadd.f32 %v575, %v408
    %592 = vrot.lane.b32.xlu0 %v590, 64
    %v593 = vpop.permute.xlu0 %592
    %v595 = vmul.f32 %v589, %v593
    %597 = vrot.lane.b32.xlu0 %v595, 64
    %v598 = vpop.permute.xlu0 %597
    %v600 = vadd.f32 %v582, %v598
    %v601 = vtanh.pop %v600
    %603 = vrot.lane.b32.xlu0 %v601, 64
    %v604 = vpop.permute.xlu0 %603
    %v606 = vsub.f32 %v535, %v604
    %608 = vrot.lane.b32.xlu0 %v606, 32
    %v609 = vpop.permute.xlu0 %608
    %v611 = vmul.f32 %v589, %v609
    %613 = vrot.lane.b32.xlu0 %v611, 32
    %v614 = vpop.permute.xlu0 %613
    %v616 = vadd.f32 %v601, %v614
    %vm617 = vcmp.gt.s32.totalorder %v337, 2
    %v618 = vsel %vm617, 1, 0
    %619 = vset.pattern.permute.xlu0 0
    %620 = vperm.xlu0 %619, %v618
    %v621 = vpop.permute.xlu0 %620
    %vm622 = vcmp.eq.s32.totalorder %v621, 1
    %624 = vrot.lane.b32.xlu0 %v616, 64
    %v625 = vpop.permute.xlu0 %624
    %v627 = vsel %vm622, %v625, %v535
    %v628 = vpack.c.bf16 %v627, %v627
    %v630 = vsel %vm247, %v628, 0
    %632 = vmatprep.subr.bf16.mxu0 0
    %633 = vmatpush1.bf16.msra.mxu0 0
    %634 = vmatprep.subr.bf16.mxu0 0
    %635 = vmatpush1.bf16.msra.mxu0 0
    %636 = vmatprep.subr.bf16.mxu0 0
    %637 = vmatpush1.bf16.msra.mxu0 0
    %638 = vmatprep.subr.bf16.mxu0 0
    %639 = vmatpush1.bf16.msra.mxu0 0
    %640 = vmatprep.subr.bf16.mxu0 0
    %641 = vmatpush1.bf16.msra.mxu0 0
    %642 = vmatprep.subr.bf16.mxu0 0
    %643 = vmatpush1.bf16.msra.mxu0 0
    %644 = vmatprep.subr.bf16.mxu0 0
    %645 = vmatpush1.bf16.msra.mxu0 %v347
    %646 = vmatprep.subr.bf16.mxu0 0
    %647 = vmatpush1.bf16.msra.mxu0 %v346
    %648 = vmatprep.subr.bf16.mxu0 0
    %649 = vmatpush2.bf16.msra.mxu0 0
    %650 = vmatprep.subr.bf16.mxu0 0
    %651 = vmatpush2.bf16.msra.mxu0 0
    %652 = vmatprep.subr.bf16.mxu0 0
    %653 = vmatpush2.bf16.msra.mxu0 0
    %654 = vmatprep.subr.bf16.mxu0 0
    %655 = vmatpush2.bf16.msra.mxu0 0
    %656 = vmatprep.subr.bf16.mxu0 0
    %657 = vmatpush2.bf16.msra.mxu0 0
    %658 = vmatprep.subr.bf16.mxu0 0
    %659 = vmatpush2.bf16.msra.mxu0 0
    %660 = vmatprep.subr.bf16.mxu0 0
    %661 = vmatpush2.bf16.msra.mxu0 0
    %662 = vmatprep.subr.bf16.mxu0 0
    %663 = vmatpush2.bf16.msra.mxu0 0
    %664 = vmatprep.mubr.bf16.mxu0 0
    %665 = vmatmul.mubr.bf16.gmra.mxu0 %v630
    %v666 = vpop.f32.mrf.mxu0
    %v667 = vadd.f32 0.0, %v666
    %v668 = vpop.f32.mrf.mxu0
    %v669 = vpop.f32.mrf.mxu0
    %v670 = vpop.f32.mrf.mxu0
    %671 = vdwg.mxu0
    %s672 = scalar_lea.vmem [#allocation2], 6
    %v673 = vld [vmem:[%s672] sm:$0x3]
    %v674 = vunpack.c.l.bf16 %v673
    %v675 = vadd.f32 %v674, %v667
    %v676 = vxor.u32 %v675, 2147483648
    %v677 = vmul.f32 %v676, 1.442695
    %v678 = vpow.pop %v677
    %v679 = vadd.f32 %v678, 1.0
    %v680 = vrcp.pop %v679
    %v681 = vmul.f32 1.0, %v680
    %v682 = vadd.f32 %v667, %v408
    %684 = vrot.lane.b32.xlu0 %v682, 64
    %v685 = vpop.permute.xlu0 %684
    %v687 = vmul.f32 %v681, %v685
    %689 = vrot.lane.b32.xlu0 %v687, 64
    %v690 = vpop.permute.xlu0 %689
    %v692 = vadd.f32 %v674, %v690
    %v693 = vtanh.pop %v692
    %695 = vrot.lane.b32.xlu0 %v693, 64
    %v696 = vpop.permute.xlu0 %695
    %v698 = vsub.f32 %v627, %v696
    %700 = vrot.lane.b32.xlu0 %v698, 32
    %v701 = vpop.permute.xlu0 %700
    %v703 = vmul.f32 %v681, %v701
    %705 = vrot.lane.b32.xlu0 %v703, 32
    %v706 = vpop.permute.xlu0 %705
    %v708 = vadd.f32 %v693, %v706
    %vm709 = vcmp.gt.s32.totalorder %v337, 3
    %v710 = vsel %vm709, 1, 0
    %711 = vset.pattern.permute.xlu0 0
    %712 = vperm.xlu0 %711, %v710
    %v713 = vpop.permute.xlu0 %712
    %vm714 = vcmp.eq.s32.totalorder %v713, 1
    %716 = vrot.lane.b32.xlu0 %v708, 64
    %v717 = vpop.permute.xlu0 %716
    %v719 = vsel %vm714, %v717, %v627
    %v720 = vpack.c.bf16 %v719, %v719
    %v722 = vsel %vm247, %v720, 0
    %724 = vmatprep.subr.bf16.mxu0 0
    %725 = vmatpush1.bf16.msra.mxu0 0
    %726 = vmatprep.subr.bf16.mxu0 0
    %727 = vmatpush1.bf16.msra.mxu0 0
    %728 = vmatprep.subr.bf16.mxu0 0
    %729 = vmatpush1.bf16.msra.mxu0 0
    %730 = vmatprep.subr.bf16.mxu0 0
    %731 = vmatpush1.bf16.msra.mxu0 0
    %732 = vmatprep.subr.bf16.mxu0 0
    %733 = vmatpush1.bf16.msra.mxu0 0
    %734 = vmatprep.subr.bf16.mxu0 0
    %735 = vmatpush1.bf16.msra.mxu0 0
    %736 = vmatprep.subr.bf16.mxu0 0
    %737 = vmatpush1.bf16.msra.mxu0 %v347
    %738 = vmatprep.subr.bf16.mxu0 0
    %739 = vmatpush1.bf16.msra.mxu0 %v346
    %740 = vmatprep.subr.bf16.mxu0 0
    %741 = vmatpush2.bf16.msra.mxu0 0
    %742 = vmatprep.subr.bf16.mxu0 0
    %743 = vmatpush2.bf16.msra.mxu0 0
    %744 = vmatprep.subr.bf16.mxu0 0
    %745 = vmatpush2.bf16.msra.mxu0 0
    %746 = vmatprep.subr.bf16.mxu0 0
    %747 = vmatpush2.bf16.msra.mxu0 0
    %748 = vmatprep.subr.bf16.mxu0 0
    %749 = vmatpush2.bf16.msra.mxu0 0
    %750 = vmatprep.subr.bf16.mxu0 0
    %751 = vmatpush2.bf16.msra.mxu0 0
    %752 = vmatprep.subr.bf16.mxu0 0
    %753 = vmatpush2.bf16.msra.mxu0 0
    %754 = vmatprep.subr.bf16.mxu0 0
    %755 = vmatpush2.bf16.msra.mxu0 0
    %756 = vmatprep.mubr.bf16.mxu0 0
    %757 = vmatmul.mubr.bf16.gmra.mxu0 %v722
    %v758 = vpop.f32.mrf.mxu0
    %v759 = vadd.f32 0.0, %v758
    %v760 = vpop.f32.mrf.mxu0
    %v761 = vpop.f32.mrf.mxu0
    %v762 = vpop.f32.mrf.mxu0
    %763 = vdwg.mxu0
    %s764 = scalar_lea.vmem [#allocation2], 8
    %v765 = vld [vmem:[%s764] sm:$0x3]
    %v766 = vunpack.c.l.bf16 %v765
    %v767 = vadd.f32 %v766, %v759
    %v768 = vxor.u32 %v767, 2147483648
    %v769 = vmul.f32 %v768, 1.442695
    %v770 = vpow.pop %v769
    %v771 = vadd.f32 %v770, 1.0
    %v772 = vrcp.pop %v771
    %v773 = vmul.f32 1.0, %v772
    %v774 = vadd.f32 %v759, %v408
    %776 = vrot.lane.b32.xlu0 %v774, 64
    %v777 = vpop.permute.xlu0 %776
    %v779 = vmul.f32 %v773, %v777
    %781 = vrot.lane.b32.xlu0 %v779, 64
    %v782 = vpop.permute.xlu0 %781
    %v784 = vadd.f32 %v766, %v782
    %v785 = vtanh.pop %v784
    %787 = vrot.lane.b32.xlu0 %v785, 64
    %v788 = vpop.permute.xlu0 %787
    %v790 = vsub.f32 %v719, %v788
    %792 = vrot.lane.b32.xlu0 %v790, 32
    %v793 = vpop.permute.xlu0 %792
    %v795 = vmul.f32 %v773, %v793
    %797 = vrot.lane.b32.xlu0 %v795, 32
    %v798 = vpop.permute.xlu0 %797
    %v800 = vadd.f32 %v785, %v798
    %vm801 = vcmp.gt.s32.totalorder %v337, 4
    %v802 = vsel %vm801, 1, 0
    %803 = vset.pattern.permute.xlu0 0
    %804 = vperm.xlu0 %803, %v802
    %v805 = vpop.permute.xlu0 %804
    %vm806 = vcmp.eq.s32.totalorder %v805, 1
    %808 = vrot.lane.b32.xlu0 %v800, 64
    %v809 = vpop.permute.xlu0 %808
    %v811 = vsel %vm806, %v809, %v719
    %v812 = vpack.c.bf16 %v811, %v811
    %v814 = vsel %vm247, %v812, 0
    %816 = vmatprep.subr.bf16.mxu0 0
    %817 = vmatpush1.bf16.msra.mxu0 0
    %818 = vmatprep.subr.bf16.mxu0 0
    %819 = vmatpush1.bf16.msra.mxu0 0
    %820 = vmatprep.subr.bf16.mxu0 0
    %821 = vmatpush1.bf16.msra.mxu0 0
    %822 = vmatprep.subr.bf16.mxu0 0
    %823 = vmatpush1.bf16.msra.mxu0 0
    %824 = vmatprep.subr.bf16.mxu0 0
    %825 = vmatpush1.bf16.msra.mxu0 0
    %826 = vmatprep.subr.bf16.mxu0 0
    %827 = vmatpush1.bf16.msra.mxu0 0
    %828 = vmatprep.subr.bf16.mxu0 0
    %829 = vmatpush1.bf16.msra.mxu0 %v347
    %830 = vmatprep.subr.bf16.mxu0 0
    %831 = vmatpush1.bf16.msra.mxu0 %v346
    %832 = vmatprep.subr.bf16.mxu0 0
    %833 = vmatpush2.bf16.msra.mxu0 0
    %834 = vmatprep.subr.bf16.mxu0 0
    %835 = vmatpush2.bf16.msra.mxu0 0
    %836 = vmatprep.subr.bf16.mxu0 0
    %837 = vmatpush2.bf16.msra.mxu0 0
    %838 = vmatprep.subr.bf16.mxu0 0
    %839 = vmatpush2.bf16.msra.mxu0 0
    %840 = vmatprep.subr.bf16.mxu0 0
    %841 = vmatpush2.bf16.msra.mxu0 0
    %842 = vmatprep.subr.bf16.mxu0 0
    %843 = vmatpush2.bf16.msra.mxu0 0
    %844 = vmatprep.subr.bf16.mxu0 0
    %845 = vmatpush2.bf16.msra.mxu0 0
    %846 = vmatprep.subr.bf16.mxu0 0
    %847 = vmatpush2.bf16.msra.mxu0 0
    %848 = vmatprep.mubr.bf16.mxu0 0
    %849 = vmatmul.mubr.bf16.gmra.mxu0 %v814
    %v850 = vpop.f32.mrf.mxu0
    %v851 = vadd.f32 0.0, %v850
    %v852 = vpop.f32.mrf.mxu0
    %v853 = vpop.f32.mrf.mxu0
    %v854 = vpop.f32.mrf.mxu0
    %855 = vdwg.mxu0
    %s856 = scalar_lea.vmem [#allocation2], 10
    %v857 = vld [vmem:[%s856] sm:$0x3]
    %v858 = vunpack.c.l.bf16 %v857
    %v859 = vadd.f32 %v858, %v851
    %v860 = vxor.u32 %v859, 2147483648
    %v861 = vmul.f32 %v860, 1.442695
    %v862 = vpow.pop %v861
    %v863 = vadd.f32 %v862, 1.0
    %v864 = vrcp.pop %v863
    %v865 = vmul.f32 1.0, %v864
    %v866 = vadd.f32 %v851, %v408
    %868 = vrot.lane.b32.xlu0 %v866, 64
    %v869 = vpop.permute.xlu0 %868
    %v871 = vmul.f32 %v865, %v869
    %873 = vrot.lane.b32.xlu0 %v871, 64
    %v874 = vpop.permute.xlu0 %873
    %v876 = vadd.f32 %v858, %v874
    %v877 = vtanh.pop %v876
    %879 = vrot.lane.b32.xlu0 %v877, 64
    %v880 = vpop.permute.xlu0 %879
    %v882 = vsub.f32 %v811, %v880
    %884 = vrot.lane.b32.xlu0 %v882, 32
    %v885 = vpop.permute.xlu0 %884
    %v887 = vmul.f32 %v865, %v885
    %889 = vrot.lane.b32.xlu0 %v887, 32
    %v890 = vpop.permute.xlu0 %889
    %v892 = vadd.f32 %v877, %v890
    %vm893 = vcmp.gt.s32.totalorder %v337, 5
    %v894 = vsel %vm893, 1, 0
    %895 = vset.pattern.permute.xlu0 0
    %896 = vperm.xlu0 %895, %v894
    %v897 = vpop.permute.xlu0 %896
    %vm898 = vcmp.eq.s32.totalorder %v897, 1
    %900 = vrot.lane.b32.xlu0 %v892, 64
    %v901 = vpop.permute.xlu0 %900
    %v903 = vsel %vm898, %v901, %v811
    %v904 = vpack.c.bf16 %v903, %v903
    %v906 = vsel %vm247, %v904, 0
    %908 = vmatprep.subr.bf16.mxu0 0
    %909 = vmatpush1.bf16.msra.mxu0 0
    %910 = vmatprep.subr.bf16.mxu0 0
    %911 = vmatpush1.bf16.msra.mxu0 0
    %912 = vmatprep.subr.bf16.mxu0 0
    %913 = vmatpush1.bf16.msra.mxu0 0
    %914 = vmatprep.subr.bf16.mxu0 0
    %915 = vmatpush1.bf16.msra.mxu0 0
    %916 = vmatprep.subr.bf16.mxu0 0
    %917 = vmatpush1.bf16.msra.mxu0 0
    %918 = vmatprep.subr.bf16.mxu0 0
    %919 = vmatpush1.bf16.msra.mxu0 0
    %920 = vmatprep.subr.bf16.mxu0 0
    %921 = vmatpush1.bf16.msra.mxu0 %v347
    %922 = vmatprep.subr.bf16.mxu0 0
    %923 = vmatpush1.bf16.msra.mxu0 %v346
    %924 = vmatprep.subr.bf16.mxu0 0
    %925 = vmatpush2.bf16.msra.mxu0 0
    %926 = vmatprep.subr.bf16.mxu0 0
    %927 = vmatpush2.bf16.msra.mxu0 0
    %928 = vmatprep.subr.bf16.mxu0 0
    %929 = vmatpush2.bf16.msra.mxu0 0
    %930 = vmatprep.subr.bf16.mxu0 0
    %931 = vmatpush2.bf16.msra.mxu0 0
    %932 = vmatprep.subr.bf16.mxu0 0
    %933 = vmatpush2.bf16.msra.mxu0 0
    %934 = vmatprep.subr.bf16.mxu0 0
    %935 = vmatpush2.bf16.msra.mxu0 0
    %936 = vmatprep.subr.bf16.mxu0 0
    %937 = vmatpush2.bf16.msra.mxu0 0
    %938 = vmatprep.subr.bf16.mxu0 0
    %939 = vmatpush2.bf16.msra.mxu0 0
    %940 = vmatprep.mubr.bf16.mxu0 0
    %941 = vmatmul.mubr.bf16.gmra.mxu0 %v906
    %v942 = vpop.f32.mrf.mxu0
    %v943 = vadd.f32 0.0, %v942
    %v944 = vpop.f32.mrf.mxu0
    %v945 = vpop.f32.mrf.mxu0
    %v946 = vpop.f32.mrf.mxu0
    %947 = vdwg.mxu0
    %s948 = scalar_lea.vmem [#allocation2], 12
    %v949 = vld [vmem:[%s948] sm:$0x3]
    %v950 = vunpack.c.l.bf16 %v949
    %v951 = vadd.f32 %v950, %v943
    %v952 = vxor.u32 %v951, 2147483648
    %v953 = vmul.f32 %v952, 1.442695
    %v954 = vpow.pop %v953
    %v955 = vadd.f32 %v954, 1.0
    %v956 = vrcp.pop %v955
    %v957 = vmul.f32 1.0, %v956
    %v958 = vadd.f32 %v943, %v408
    %960 = vrot.lane.b32.xlu0 %v958, 64
    %v961 = vpop.permute.xlu0 %960
    %v963 = vmul.f32 %v957, %v961
    %965 = vrot.lane.b32.xlu0 %v963, 64
    %v966 = vpop.permute.xlu0 %965
    %v968 = vadd.f32 %v950, %v966
    %v969 = vtanh.pop %v968
    %971 = vrot.lane.b32.xlu0 %v969, 64
    %v972 = vpop.permute.xlu0 %971
    %v974 = vsub.f32 %v903, %v972
    %976 = vrot.lane.b32.xlu0 %v974, 32
    %v977 = vpop.permute.xlu0 %976
    %v979 = vmul.f32 %v957, %v977
    %981 = vrot.lane.b32.xlu0 %v979, 32
    %v982 = vpop.permute.xlu0 %981
    %v984 = vadd.f32 %v969, %v982
    %vm985 = vcmp.gt.s32.totalorder %v337, 6
    %v986 = vsel %vm985, 1, 0
    %987 = vset.pattern.permute.xlu0 0
    %988 = vperm.xlu0 %987, %v986
    %v989 = vpop.permute.xlu0 %988
    %vm990 = vcmp.eq.s32.totalorder %v989, 1
    %992 = vrot.lane.b32.xlu0 %v984, 64
    %v993 = vpop.permute.xlu0 %992
    %v995 = vsel %vm990, %v993, %v903
    %v996 = vpack.c.bf16 %v995, %v995
    %v998 = vsel %vm247, %v996, 0
    %1000 = vmatprep.subr.bf16.mxu0 0
    %1001 = vmatpush1.bf16.msra.mxu0 0
    %1002 = vmatprep.subr.bf16.mxu0 0
    %1003 = vmatpush1.bf16.msra.mxu0 0
    %1004 = vmatprep.subr.bf16.mxu0 0
    %1005 = vmatpush1.bf16.msra.mxu0 0
    %1006 = vmatprep.subr.bf16.mxu0 0
    %1007 = vmatpush1.bf16.msra.mxu0 0
    %1008 = vmatprep.subr.bf16.mxu0 0
    %1009 = vmatpush1.bf16.msra.mxu0 0
    %1010 = vmatprep.subr.bf16.mxu0 0
    %1011 = vmatpush1.bf16.msra.mxu0 0
    %1012 = vmatprep.subr.bf16.mxu0 0
    %1013 = vmatpush1.bf16.msra.mxu0 %v347
    %1014 = vmatprep.subr.bf16.mxu0 0
    %1015 = vmatpush1.bf16.msra.mxu0 %v346
    %1016 = vmatprep.subr.bf16.mxu0 0
    %1017 = vmatpush2.bf16.msra.mxu0 0
    %1018 = vmatprep.subr.bf16.mxu0 0
    %1019 = vmatpush2.bf16.msra.mxu0 0
    %1020 = vmatprep.subr.bf16.mxu0 0
    %1021 = vmatpush2.bf16.msra.mxu0 0
    %1022 = vmatprep.subr.bf16.mxu0 0
    %1023 = vmatpush2.bf16.msra.mxu0 0
    %1024 = vmatprep.subr.bf16.mxu0 0
    %1025 = vmatpush2.bf16.msra.mxu0 0
    %1026 = vmatprep.subr.bf16.mxu0 0
    %1027 = vmatpush2.bf16.msra.mxu0 0
    %1028 = vmatprep.subr.bf16.mxu0 0
    %1029 = vmatpush2.bf16.msra.mxu0 0
    %1030 = vmatprep.subr.bf16.mxu0 0
    %1031 = vmatpush2.bf16.msra.mxu0 0
    %1032 = vmatprep.mubr.bf16.mxu0 0
    %1033 = vmatmul.mubr.bf16.gmra.mxu0 %v998
    %v1034 = vpop.f32.mrf.mxu0
    %v1035 = vadd.f32 0.0, %v1034
    %v1036 = vpop.f32.mrf.mxu0
    %v1037 = vpop.f32.mrf.mxu0
    %v1038 = vpop.f32.mrf.mxu0
    %1039 = vdwg.mxu0
    %s1040 = scalar_lea.vmem [#allocation2], 14
    %v1041 = vld [vmem:[%s1040] sm:$0x3]
    %v1042 = vunpack.c.l.bf16 %v1041
    %v1043 = vadd.f32 %v1042, %v1035
    %v1044 = vxor.u32 %v1043, 2147483648
    %v1045 = vmul.f32 %v1044, 1.442695
    %v1046 = vpow.pop %v1045
    %v1047 = vadd.f32 %v1046, 1.0
    %v1048 = vrcp.pop %v1047
    %v1049 = vmul.f32 1.0, %v1048
    %v1050 = vadd.f32 %v1035, %v408
    %1052 = vrot.lane.b32.xlu0 %v1050, 64
    %v1053 = vpop.permute.xlu0 %1052
    %v1055 = vmul.f32 %v1049, %v1053
    %1057 = vrot.lane.b32.xlu0 %v1055, 64
    %v1058 = vpop.permute.xlu0 %1057
    %v1060 = vadd.f32 %v1042, %v1058
    %v1061 = vtanh.pop %v1060
    %1063 = vrot.lane.b32.xlu0 %v1061, 64
    %v1064 = vpop.permute.xlu0 %1063
    %v1066 = vsub.f32 %v995, %v1064
    %1068 = vrot.lane.b32.xlu0 %v1066, 32
    %v1069 = vpop.permute.xlu0 %1068
    %v1071 = vmul.f32 %v1049, %v1069
    %1073 = vrot.lane.b32.xlu0 %v1071, 32
    %v1074 = vpop.permute.xlu0 %1073
    %v1076 = vadd.f32 %v1061, %v1074
    %vm1077 = vcmp.gt.s32.totalorder %v337, 7
    %v1078 = vsel %vm1077, 1, 0
    %1079 = vset.pattern.permute.xlu0 0
    %1080 = vperm.xlu0 %1079, %v1078
    %v1081 = vpop.permute.xlu0 %1080
    %vm1082 = vcmp.eq.s32.totalorder %v1081, 1
    %1084 = vrot.lane.b32.xlu0 %v1076, 64
    %v1085 = vpop.permute.xlu0 %1084
    %v1087 = vsel %vm1082, %v1085, %v995
    %v1088 = vpack.c.bf16 %v1087, %v1087
    %v1089 = vld [vmem:[%s7] sm:$0xf]
    %v1090 = vld [vmem:[%s7 + $0x4] sm:$0xf]
    %v1091 = vld [vmem:[%s7 + $0x8] sm:$0xf]
    %v1092 = vld [vmem:[%s7 + $0xc] sm:$0xf]
    %v1093 = vld [vmem:[%s8] sm:$0x1]
    %v1095 = vlaneseq
    %v1096 = vshrl.u32 %v1095, 7
    %v1097 = vsub.s32 0, %v1096
    %v1098 = vrot.slane %v1093, %v1097
    %v1104 = vunpack.c.l.b16 %v1089
    %v1105 = vunpack.c.l.b16 %v1090
    %v1106 = vunpack.c.l.b16 %v1091
    %v1107 = vunpack.c.l.b16 %v1092
    %v1108 = vpack.c.b16 %v1105, %v1104
    %v1109 = vpack.c.b16 %v1107, %v1106
    %v1113 = vsel %vm247, %v1088, 0
    %1115 = vmatprep.subr.bf16.mxu0 0
    %1116 = vmatpush1.bf16.msra.mxu0 0
    %1117 = vmatprep.subr.bf16.mxu0 0
    %1118 = vmatpush1.bf16.msra.mxu0 0
    %1119 = vmatprep.subr.bf16.mxu0 0
    %1120 = vmatpush1.bf16.msra.mxu0 0
    %1121 = vmatprep.subr.bf16.mxu0 0
    %1122 = vmatpush1.bf16.msra.mxu0 0
    %1123 = vmatprep.subr.bf16.mxu0 0
    %1124 = vmatpush1.bf16.msra.mxu0 0
    %1125 = vmatprep.subr.bf16.mxu0 0
    %1126 = vmatpush1.bf16.msra.mxu0 0
    %1127 = vmatprep.subr.bf16.mxu0 0
    %1128 = vmatpush1.bf16.msra.mxu0 %v1109
    %1129 = vmatprep.subr.bf16.mxu0 0
    %1130 = vmatpush1.bf16.msra.mxu0 %v1108
    %1131 = vmatprep.subr.bf16.mxu0 0
    %1132 = vmatpush2.bf16.msra.mxu0 0
    %1133 = vmatprep.subr.bf16.mxu0 0
    %1134 = vmatpush2.bf16.msra.mxu0 0
    %1135 = vmatprep.subr.bf16.mxu0 0
    %1136 = vmatpush2.bf16.msra.mxu0 0
    %1137 = vmatprep.subr.bf16.mxu0 0
    %1138 = vmatpush2.bf16.msra.mxu0 0
    %1139 = vmatprep.subr.bf16.mxu0 0
    %1140 = vmatpush2.bf16.msra.mxu0 0
    %1141 = vmatprep.subr.bf16.mxu0 0
    %1142 = vmatpush2.bf16.msra.mxu0 0
    %1143 = vmatprep.subr.bf16.mxu0 0
    %1144 = vmatpush2.bf16.msra.mxu0 0
    %1145 = vmatprep.subr.bf16.mxu0 0
    %1146 = vmatpush2.bf16.msra.mxu0 0
    %1147 = vmatprep.mubr.bf16.mxu0 0
    %1148 = vmatmul.mubr.bf16.gmra.mxu0 %v1113
    %v1149 = vpop.f32.mrf.mxu0
    %v1150 = vadd.f32 %v1098, %v1149
    %v1151 = vpop.f32.mrf.mxu0
    %v1152 = vpop.f32.mrf.mxu0
    %v1153 = vpop.f32.mrf.mxu0
    %1154 = vdwg.mxu0
    %v1155 = vmul.f32 %v1150, %v1150
    %vm1156 = vcmask 257024
    %v1157 = vsel %vm1156, %v1155, 0.0
    %1158 = vadd.xlane.f32.xlu0 %v1157
    %v1159 = vpop.xlane.xlu0 %1158
    %v1160 = vrsqrt.pop %v1159
    %v1161 = vmul.f32 %v1159, %v1160
    %vm1162 = vcmp.eq.f32.partialorder %v1159, inf
    %v1163 = vsel %vm1162, %v1159, %v1161
    %vm1164 = vcmp.eq.f32.partialorder %v1159, 0.0
    %v1165 = vand.u32 %v1159, 2147483648
    %v1166 = vsel %vm1164, %v1165, %v1163
    %v1167 = vadd.f32 %v1166, 1e-09
    %v1168 = vrcp.pop %v1167
    %v1169 = vmul.f32 %v1150, %v1168
    %1170 = vst.msk [vmem:[#allocation12] sm:$0xf] %vm1156, %v1169
    // Predicated region
    $region58: #{tpu_custom_call.1} parent=1 // pred_check
      _
    $region59: #{tpu_custom_call.1} parent=1 // pred_check_branch
      %1172 = sbr.rel (0) target = $region61
    $region60: #{tpu_custom_call.1} parent=1 // pred_region
      %s1174 = ssub.s32 64, 64
      %1175 = vsyncadd [#allocation5], %s1174
      %s1177 = sshll.u32 [#allocation12], 4
      %s1178 = int_to_ptr.vmem [resolvable:$true] %s1177
      %1180 = dma.vmem_to_hbm [thread:$0]  %s1178, 64, %s9, [#allocation5]
    $region61: #{tpu_custom_call.1} parent=1 // pred_fallthru
      _
    // Predicated region
    $region62: #{tpu_custom_call.1} parent=1 // pred_check
      _
    $region63: #{tpu_custom_call.1} parent=1 // pred_check_branch
      %1182 = sbr.rel (0) target = $region65
    $region64: #{tpu_custom_call.1} parent=1 // pred_region
      %1183 = dma.done [#allocation5], 64
    $region65: #{tpu_custom_call.1} parent=1 // pred_fallthru
      _
    %1184 = vsyncpa [#allocation4], 1
    %1185 = vsyncpa [#allocation7], 1
    %1186 = vsyncpa [#allocation10], 1
    %1187 = vsyncpa [#allocation5], 1

</llo_original>
